<compile_context>
chip_gen: v6e
topology: v6e:2x2x1
jax: 0.10.0
libtpu: 0.0.40
codegen_flags: <defaults>
</compile_context>

<pallas_src>
import functools

import jax
import jax.numpy as jnp
import numpy as np
from jax.experimental import pallas as pl
from jax.experimental.pallas import tpu as pltpu

EPS = 1e-5
NEG_KPM = -1e9      # additive bias for padded keys
NEG_AMASK = -1e8    # matches attn_mask.masked_fill(mask, -1e8) in the module
VMEM_LIMIT = 32 * 1024 * 1024   # safe on v5e/v6e/v7x; raises v5e's 16 MiB default


def _ln(x, w, b):
    """Row-wise LayerNorm over the last (lane) axis, f32 math."""
    mean = jnp.mean(x, axis=-1, keepdims=True)
    var = jnp.mean(jnp.square(x - mean), axis=-1, keepdims=True)
    return (x - mean) * jax.lax.rsqrt(var + EPS) * w + b


# ---------------------------------------------------------------------------
# Fused layer kernel: [pre-LN] + Q/KV proj + MHA + out-proj + residual
#                     [+ post-LN] + [pre-LN] + fc1/ReLU/fc2 + residual [+ post-LN]
# One grid step per batch element; all weights stay VMEM-resident (constant
# index maps -> fetched once, no re-DMA across grid steps).
# ---------------------------------------------------------------------------
def _layer_kernel(*refs, num_heads, normalize_before, has_attn_mask):
    if has_attn_mask:
        (x_ref, xt_ref, kb_ref, am_ref,
         wq_ref, bq_ref, wkv_ref, bkv_ref, wo_ref, bo_ref,
         ln1w_ref, ln1b_ref,
         w1_ref, b1_ref, w2_ref, b2_ref, ln2w_ref, ln2b_ref,
         o_ref) = refs
    else:
        (x_ref, xt_ref, kb_ref,
         wq_ref, bq_ref, wkv_ref, bkv_ref, wo_ref, bo_ref,
         ln1w_ref, ln1b_ref,
         w1_ref, b1_ref, w2_ref, b2_ref, ln2w_ref, ln2b_ref,
         o_ref) = refs
        am_ref = None

    x = x_ref[0].astype(jnp.float32)        # (T, E)  (also the residual)
    xt = xt_ref[0].astype(jnp.float32)      # (S, E)
    ln1w = ln1w_ref[...]
    ln1b = ln1b_ref[...]

    if normalize_before:
        xq = _ln(x, ln1w, ln1b)
        xkv = _ln(xt, ln1w, ln1b)
    else:
        xq, xkv = x, xt

    # 1/sqrt(head_dim) is folded into wq/bq at prepare_params time.
    q = jnp.dot(xq, wq_ref[...], preferred_element_type=jnp.float32) + bq_ref[...]
    # K and V projections fused into one (S,E)@(E,2E) MXU dot.
    kv = jnp.dot(xkv, wkv_ref[...], preferred_element_type=jnp.float32) + bkv_ref[...]

    E = q.shape[-1]
    k = kv[:, :E]                           # (S, E)
    v = kv[:, E:]                           # (S, E)

    # Additive mask built in-kernel: (1, S) key-padding bias broadcast over
    # query rows (+ optional (T, S) attn-mask bias).  No (B*H, T, S) tensor.
    bias = kb_ref[0]                        # (1, S)
    if am_ref is not None:
        bias = bias + am_ref[...]           # (T, S)

    hd = E // num_heads
    ctx_parts = []
    for h in range(num_heads):              # static unroll; per-head values stay in vregs
        lo = h * hd
        qh = q[:, lo:lo + hd]               # (T, hd)
        kh = k[:, lo:lo + hd]               # (S, hd)
        vh = v[:, lo:lo + hd]               # (S, hd)
        s = jax.lax.dot_general(qh, kh, (((1,), (1,)), ((), ())),
                                preferred_element_type=jnp.float32)   # (T, S)
        s = s + bias
        m = jnp.max(s, axis=-1, keepdims=True)
        p = jnp.exp(s - m)
        denom = jnp.sum(p, axis=-1, keepdims=True)
        p = p * pl.reciprocal(denom, approx=True)     # EUP slot, nearly free
        ctx_parts.append(jnp.dot(p, vh, preferred_element_type=jnp.float32))
    ctx = jnp.concatenate(ctx_parts, axis=-1)         # (T, E), lane-dense

    y = jnp.dot(ctx, wo_ref[...], preferred_element_type=jnp.float32)
    y = y + bo_ref[...] + x                           # out-proj + residual
    if not normalize_before:
        y = _ln(y, ln1w, ln1b)

    # --- FFN block (intermediate never leaves VMEM) ---
    ln2w = ln2w_ref[...]
    ln2b = ln2b_ref[...]
    z = _ln(y, ln2w, ln2b) if normalize_before else y
    hmid = jnp.dot(z, w1_ref[...], preferred_element_type=jnp.float32) + b1_ref[...]
    hmid = jnp.maximum(hmid, 0.0)                     # ReLU
    out = jnp.dot(hmid, w2_ref[...], preferred_element_type=jnp.float32)
    out = out + b2_ref[...] + y                       # fc2 + residual
    if not normalize_before:
        out = _ln(out, ln2w, ln2b)
    o_ref[0] = out.astype(o_ref.dtype)


def fused_layer(xb, xtb, kbias, amask, prep, num_heads, normalize_before):
    """xb: (B,T,E), xtb: (B,S,E), kbias: (B,1,S) additive f32 -> (B,T,E)."""
    B, T, E = xb.shape
    S = xtb.shape[1]
    has_attn_mask = amask is not None

    in_specs = [
        pl.BlockSpec((1, T, E), lambda b: (b, 0, 0)),
        pl.BlockSpec((1, S, E), lambda b: (b, 0, 0)),
        pl.BlockSpec((1, 1, S), lambda b: (b, 0, 0)),
    ]
    operands = [xb, xtb, kbias]
    if has_attn_mask:
        in_specs.append(pl.BlockSpec((T, S), lambda b: (0, 0)))
        operands.append(amask)
    for name in ("wq", "bq", "wkv", "bkv", "wo", "bo", "ln1_w", "ln1_b",
                 "w1", "b1", "w2", "b2", "ln2_w", "ln2_b"):
        w = prep[name]                      # all 2D, constant block -> VMEM-resident
        in_specs.append(pl.BlockSpec(w.shape, lambda b: (0, 0)))
        operands.append(w)

    kernel = functools.partial(_layer_kernel, num_heads=num_heads,
                               normalize_before=normalize_before,
                               has_attn_mask=has_attn_mask)
    return pl.pallas_call(
        kernel,
        out_shape=jax.ShapeDtypeStruct((B, T, E), xb.dtype),
        grid=(B,),
        in_specs=in_specs,
        out_specs=pl.BlockSpec((1, T, E), lambda b: (b, 0, 0)),
        compiler_params=pltpu.CompilerParams(
            dimension_semantics=("parallel",),
            vmem_limit_bytes=VMEM_LIMIT),
    )(*operands)


# ---------------------------------------------------------------------------
# One-time parameter prep + module forward (glue in plain JAX)
# ---------------------------------------------------------------------------
def prepare_params(p, num_heads):
    """Pre-transpose weights to (in, out), fold 1/sqrt(hd) into q proj,
    fuse K and V projection weights into one (E, 2E) matrix."""
    E = p["q_w"].shape[0]
    hd = E // num_heads
    scale = float(hd) ** -0.5
    r = lambda a: a.reshape(1, -1)
    wkv = jnp.concatenate([p["k_w"].T, p["v_w"].T], axis=1)          # (E, 2E)
    bkv = jnp.concatenate([r(p["k_b"]), r(p["v_b"])], axis=1)        # (1, 2E)
    return {
        "wq": (p["q_w"] * scale).T, "bq": r(p["q_b"] * scale),
        "wkv": wkv,                 "bkv": bkv,
        "wo": p["out_w"].T,         "bo": r(p["out_b"]),
        "w1": p["fc1_w"].T,         "b1": r(p["fc1_b"]),
        "w2": p["fc2_w"].T,         "b2": r(p["fc2_b"]),
        "ln1_w": r(p["ln1_w"]),     "ln1_b": r(p["ln1_b"]),
        "ln2_w": r(p["ln2_w"]),     "ln2_b": r(p["ln2_b"]),
    }


def transformer_immt_encoder_layer(id, x, x_txt, encoder_padding_mask,
                                   attn_mask, prep, num_heads,
                                   normalize_before=False):
    # `id` only selects which auxiliary attention weights fairseq returns;
    # the layer output is identical, so it is ignored here.
    T, B, E = x.shape
    S = x_txt.shape[0]

    xb = jnp.transpose(x, (1, 0, 2))        # (B, T, E)
    xtb = jnp.transpose(x_txt, (1, 0, 2))   # (B, S, E)

    if encoder_padding_mask is not None:
        kbias = jnp.where(encoder_padding_mask.astype(bool), NEG_KPM, 0.0)
        kbias = kbias.astype(jnp.float32).reshape(B, 1, S)
    else:
        kbias = jnp.zeros((B, 1, S), jnp.float32)
    amask = None
    if attn_mask is not None:
        amask = jnp.where(attn_mask.astype(bool), NEG_AMASK, 0.0).astype(jnp.float32)

    yb = fused_layer(xb, xtb, kbias, amask, prep, num_heads,
                     normalize_before)                  # (B, T, E)
    return jnp.transpose(yb, (1, 0, 2))                 # (T, B, E)


# ---------------------------------------------------------------------------
# Pure-JAX reference (for sanity check)
# ---------------------------------------------------------------------------
def reference_forward(x, x_txt, kpm, attn_mask, p, H, normalize_before=False):
    def ln(z, w, b):
        m = z.mean(-1, keepdims=True)
        v = ((z - m) ** 2).mean(-1, keepdims=True)
        return (z - m) / jnp.sqrt(v + EPS) * w + b

    def lin(z, w, b):
        return z @ w.T + b

    T, B, E = x.shape
    S = x_txt.shape[0]
    hd = E // H
    residual = x
    if normalize_before:
        x = ln(x, p["ln1_w"], p["ln1_b"])
        x_txt = ln(x_txt, p["ln1_w"], p["ln1_b"])
    q = lin(x, p["q_w"], p["q_b"]) * hd ** -0.5
    k = lin(x_txt, p["k_w"], p["k_b"])
    v = lin(x_txt, p["v_w"], p["v_b"])
    q = q.reshape(T, B * H, hd).transpose(1, 0, 2)
    k = k.reshape(S, B * H, hd).transpose(1, 0, 2)
    v = v.reshape(S, B * H, hd).transpose(1, 0, 2)
    s = jnp.einsum("btd,bsd->bts", q, k)
    bias = jnp.zeros((B, H, T, S), jnp.float32)
    if attn_mask is not None:
        bias = bias + jnp.where(attn_mask.astype(bool), NEG_AMASK, 0.0)[None, None]
    if kpm is not None:
        bias = bias + jnp.where(kpm.astype(bool), NEG_KPM, 0.0)[:, None, None, :]
    s = s + bias.reshape(B * H, T, S)
    pw = jax.nn.softmax(s, axis=-1)
    o = jnp.einsum("bts,bsd->btd", pw, v).transpose(1, 0, 2).reshape(T, B, E)
    x = lin(o, p["out_w"], p["out_b"]) + residual
    if not normalize_before:
        x = ln(x, p["ln1_w"], p["ln1_b"])
    residual = x
    y = ln(x, p["ln2_w"], p["ln2_b"]) if normalize_before else x
    h = jax.nn.relu(lin(y, p["fc1_w"], p["fc1_b"]))
    x = lin(h, p["fc2_w"], p["fc2_b"]) + residual
    if not normalize_before:
        x = ln(x, p["ln2_w"], p["ln2_b"])
    return x


# ---------------------------------------------------------------------------
# Main
# ---------------------------------------------------------------------------
if __name__ == "__main__":
    T, S, B = 8, 8, 2                # sign seq, text seq, batch
    E, H, FFN = 32, 4, 64            # embed_dim, heads, ffn dim

    key = jax.random.PRNGKey(0)
    ks = jax.random.split(key, 16)

    def w(k, shape, scale=0.05):
        return (scale * jax.random.normal(k, shape)).astype(jnp.float32)

    # Parameters (torch convention: Linear weights are (out, in)).
    params = {
        "q_w": w(ks[0], (E, E)), "q_b": w(ks[1], (E,)),
        "k_w": w(ks[2], (E, E)), "k_b": w(ks[3], (E,)),
        "v_w": w(ks[4], (E, E)), "v_b": w(ks[5], (E,)),
        "out_w": w(ks[6], (E, E)), "out_b": w(ks[7], (E,)),
        "fc1_w": w(ks[8], (FFN, E)), "fc1_b": w(ks[9], (FFN,)),
        "fc2_w": w(ks[10], (E, FFN)), "fc2_b": w(ks[11], (E,)),
        "ln1_w": jnp.ones((E,), jnp.float32), "ln1_b": jnp.zeros((E,), jnp.float32),
        "ln2_w": jnp.ones((E,), jnp.float32), "ln2_b": jnp.zeros((E,), jnp.float32),
    }

    # Inputs in fairseq layout (seq_len, batch, embed_dim).
    x = jax.random.normal(ks[12], (T, B, E), jnp.float32)
    x_txt = jax.random.normal(ks[13], (S, B, E), jnp.float32)
    # key_padding_mask: (B, S), 1 = padded. Pad last 2 keys of batch 1.
    encoder_padding_mask = jnp.zeros((B, S), jnp.int32).at[1, -2:].set(1)
    # Optional (T, S) attention mask: exclude keys s >= t + 4.
    attn_mask = jnp.triu(jnp.ones((T, S), jnp.int32), k=4)

    # One-time weight preparation (not repeated per forward call).
    prep = prepare_params(params, H)

    # Test both norm orders and both mask configurations.
    configs = (
        (False, None),        # post-norm (paper default), key padding mask only
        (True, attn_mask),    # pre-norm, key padding + attn mask
    )
    for normalize_before, am in configs:
        layer = jax.jit(functools.partial(transformer_immt_encoder_layer,
                                          num_heads=H,
                                          normalize_before=normalize_before))
        out = layer(1, x, x_txt, encoder_padding_mask, am, prep)
        out = jax.block_until_ready(out)

        ref = reference_forward(x, x_txt, encoder_padding_mask, am,
                                params, H, normalize_before)
        # Slightly relaxed tolerance: softmax denominator uses the EUP
        # approximate reciprocal (pl.reciprocal(approx=True)).
        np.testing.assert_allclose(np.asarray(out), np.asarray(ref),
                                   rtol=2e-3, atol=2e-3)
    print("KERNEL_OK")
</pallas_src>

<mosaic_0001>
module attributes {stable_mosaic.version = 11 : i64} {
  func.func @_layer_kernel(%arg0: i32, %arg1: memref<1x8x32xf32, #tpu.memory_space<vmem>>, %arg2: memref<1x8x32xf32, #tpu.memory_space<vmem>>, %arg3: memref<1x1x8xf32, #tpu.memory_space<vmem>>, %arg4: memref<32x32xf32, #tpu.memory_space<vmem>>, %arg5: memref<1x32xf32, #tpu.memory_space<vmem>>, %arg6: memref<32x64xf32, #tpu.memory_space<vmem>>, %arg7: memref<1x64xf32, #tpu.memory_space<vmem>>, %arg8: memref<32x32xf32, #tpu.memory_space<vmem>>, %arg9: memref<1x32xf32, #tpu.memory_space<vmem>>, %arg10: memref<1x32xf32, #tpu.memory_space<vmem>>, %arg11: memref<1x32xf32, #tpu.memory_space<vmem>>, %arg12: memref<32x64xf32, #tpu.memory_space<vmem>>, %arg13: memref<1x64xf32, #tpu.memory_space<vmem>>, %arg14: memref<64x32xf32, #tpu.memory_space<vmem>>, %arg15: memref<1x32xf32, #tpu.memory_space<vmem>>, %arg16: memref<1x32xf32, #tpu.memory_space<vmem>>, %arg17: memref<1x32xf32, #tpu.memory_space<vmem>>, %arg18: memref<1x8x32xf32, #tpu.memory_space<vmem>>) attributes {dimension_semantics = [#tpu.dimension_semantics<parallel>], iteration_bounds = array<i64: 2>, scalar_prefetch = 0 : i64, scratch_operands = 0 : i64, tpu.core_type = #tpu.core_type<tc>, window_params = [{transform_indices = @transform_0, window_bounds = array<i64: 1, 8, 32>}, {transform_indices = @transform_1, window_bounds = array<i64: 1, 8, 32>}, {transform_indices = @transform_2, window_bounds = array<i64: 1, 1, 8>}, {pipeline_mode = #tpu.pipeline_mode<synchronous>, transform_indices = @transform_3, window_bounds = array<i64: 32, 32>}, {pipeline_mode = #tpu.pipeline_mode<synchronous>, transform_indices = @transform_4, window_bounds = array<i64: 1, 32>}, {pipeline_mode = #tpu.pipeline_mode<synchronous>, transform_indices = @transform_5, window_bounds = array<i64: 32, 64>}, {pipeline_mode = #tpu.pipeline_mode<synchronous>, transform_indices = @transform_6, window_bounds = array<i64: 1, 64>}, {pipeline_mode = #tpu.pipeline_mode<synchronous>, transform_indices = @transform_7, window_bounds = array<i64: 32, 32>}, {pipeline_mode = #tpu.pipeline_mode<synchronous>, transform_indices = @transform_8, window_bounds = array<i64: 1, 32>}, {pipeline_mode = #tpu.pipeline_mode<synchronous>, transform_indices = @transform_9, window_bounds = array<i64: 1, 32>}, {pipeline_mode = #tpu.pipeline_mode<synchronous>, transform_indices = @transform_10, window_bounds = array<i64: 1, 32>}, {pipeline_mode = #tpu.pipeline_mode<synchronous>, transform_indices = @transform_11, window_bounds = array<i64: 32, 64>}, {pipeline_mode = #tpu.pipeline_mode<synchronous>, transform_indices = @transform_12, window_bounds = array<i64: 1, 64>}, {pipeline_mode = #tpu.pipeline_mode<synchronous>, transform_indices = @transform_13, window_bounds = array<i64: 64, 32>}, {pipeline_mode = #tpu.pipeline_mode<synchronous>, transform_indices = @transform_14, window_bounds = array<i64: 1, 32>}, {pipeline_mode = #tpu.pipeline_mode<synchronous>, transform_indices = @transform_15, window_bounds = array<i64: 1, 32>}, {pipeline_mode = #tpu.pipeline_mode<synchronous>, transform_indices = @transform_16, window_bounds = array<i64: 1, 32>}, {transform_indices = @transform_17, window_bounds = array<i64: 1, 8, 32>}]} {
    %c0 = arith.constant 0 : index
    %c0_0 = arith.constant 0 : index
    %c0_1 = arith.constant 0 : index
    %0 = vector.load %arg1[%c0, %c0_0, %c0_1] : memref<1x8x32xf32, #tpu.memory_space<vmem>>, vector<1x8x32xf32>
    %1 = vector.shape_cast %0 : vector<1x8x32xf32> to vector<8x32xf32>
    %c0_2 = arith.constant 0 : index
    %c0_3 = arith.constant 0 : index
    %c0_4 = arith.constant 0 : index
    %2 = vector.load %arg2[%c0_2, %c0_3, %c0_4] : memref<1x8x32xf32, #tpu.memory_space<vmem>>, vector<1x8x32xf32>
    %3 = vector.shape_cast %2 : vector<1x8x32xf32> to vector<8x32xf32>
    %c0_5 = arith.constant 0 : index
    %c0_6 = arith.constant 0 : index
    %4 = vector.load %arg10[%c0_5, %c0_6] : memref<1x32xf32, #tpu.memory_space<vmem>>, vector<1x32xf32>
    %c0_7 = arith.constant 0 : index
    %c0_8 = arith.constant 0 : index
    %5 = vector.load %arg11[%c0_7, %c0_8] : memref<1x32xf32, #tpu.memory_space<vmem>>, vector<1x32xf32>
    %c0_9 = arith.constant 0 : index
    %c0_10 = arith.constant 0 : index
    %6 = vector.load %arg4[%c0_9, %c0_10] : memref<32x32xf32, #tpu.memory_space<vmem>>, vector<32x32xf32>
    %cst = arith.constant dense<0.000000e+00> : vector<8x32xf32>
    %7 = tpu.matmul %1, %6, %cst {dimension_numbers = #tpu.dot_dimension_numbers<[1], [0], [0], [1], [0, 0, 1, 1], [], []>} : vector<8x32xf32>, vector<32x32xf32>, vector<8x32xf32> -> vector<8x32xf32>
    %c0_11 = arith.constant 0 : index
    %c0_12 = arith.constant 0 : index
    %8 = vector.load %arg5[%c0_11, %c0_12] : memref<1x32xf32, #tpu.memory_space<vmem>>, vector<1x32xf32>
    %9 = vector.broadcast %8 : vector<1x32xf32> to vector<8x32xf32>
    %10 = arith.addf %7, %9 : vector<8x32xf32>
    %c0_13 = arith.constant 0 : index
    %c0_14 = arith.constant 0 : index
    %11 = vector.load %arg6[%c0_13, %c0_14] : memref<32x64xf32, #tpu.memory_space<vmem>>, vector<32x64xf32>
    %cst_15 = arith.constant dense<0.000000e+00> : vector<8x64xf32>
    %12 = tpu.matmul %3, %11, %cst_15 {dimension_numbers = #tpu.dot_dimension_numbers<[1], [0], [0], [1], [0, 0, 1, 1], [], []>} : vector<8x32xf32>, vector<32x64xf32>, vector<8x64xf32> -> vector<8x64xf32>
    %c0_16 = arith.constant 0 : index
    %c0_17 = arith.constant 0 : index
    %13 = vector.load %arg7[%c0_16, %c0_17] : memref<1x64xf32, #tpu.memory_space<vmem>>, vector<1x64xf32>
    %14 = vector.broadcast %13 : vector<1x64xf32> to vector<8x64xf32>
    %15 = arith.addf %12, %14 : vector<8x64xf32>
    %16 = vector.extract_strided_slice %15 {offsets = [0, 0], sizes = [8, 32], strides = [1, 1]} : vector<8x64xf32> to vector<8x32xf32>
    %17 = vector.extract_strided_slice %15 {offsets = [0, 32], sizes = [8, 32], strides = [1, 1]} : vector<8x64xf32> to vector<8x32xf32>
    %c0_18 = arith.constant 0 : index
    %c0_19 = arith.constant 0 : index
    %c0_20 = arith.constant 0 : index
    %18 = vector.load %arg3[%c0_18, %c0_19, %c0_20] : memref<1x1x8xf32, #tpu.memory_space<vmem>>, vector<1x1x8xf32>
    %19 = vector.shape_cast %18 : vector<1x1x8xf32> to vector<1x8xf32>
    %20 = vector.extract_strided_slice %10 {offsets = [0, 0], sizes = [8, 8], strides = [1, 1]} : vector<8x32xf32> to vector<8x8xf32>
    %21 = vector.extract_strided_slice %16 {offsets = [0, 0], sizes = [8, 8], strides = [1, 1]} : vector<8x32xf32> to vector<8x8xf32>
    %22 = vector.extract_strided_slice %17 {offsets = [0, 0], sizes = [8, 8], strides = [1, 1]} : vector<8x32xf32> to vector<8x8xf32>
    %cst_21 = arith.constant dense<0.000000e+00> : vector<8x8xf32>
    %23 = tpu.matmul %20, %21, %cst_21 {dimension_numbers = #tpu.dot_dimension_numbers<[1], [1], [0], [0], [0, 0, 1, 0], [], []>} : vector<8x8xf32>, vector<8x8xf32>, vector<8x8xf32> -> vector<8x8xf32>
    %24 = vector.broadcast %19 : vector<1x8xf32> to vector<8x8xf32>
    %25 = arith.addf %23, %24 : vector<8x8xf32>
    %cst_22 = arith.constant dense<0xFF800000> : vector<8xf32>
    %26 = vector.multi_reduction <maximumf>, %25, %cst_22 [1] : vector<8x8xf32> to vector<8xf32>
    %27 = vector.shape_cast %26 : vector<8xf32> to vector<8x1xf32>
    %28 = vector.broadcast %27 : vector<8x1xf32> to vector<8x8xf32>
    %29 = arith.subf %25, %28 : vector<8x8xf32>
    %30 = math.exp %29 : vector<8x8xf32>
    %cst_23 = arith.constant dense<0.000000e+00> : vector<8xf32>
    %31 = vector.multi_reduction <add>, %30, %cst_23 [1] : vector<8x8xf32> to vector<8xf32>
    %32 = vector.shape_cast %31 : vector<8xf32> to vector<8x1xf32>
    %33 = tpu.reciprocal %32 {approx = true} : vector<8x1xf32> -> vector<8x1xf32>
    %34 = vector.broadcast %33 : vector<8x1xf32> to vector<8x8xf32>
    %35 = arith.mulf %30, %34 : vector<8x8xf32>
    %cst_24 = arith.constant dense<0.000000e+00> : vector<8x8xf32>
    %36 = tpu.matmul %35, %22, %cst_24 {dimension_numbers = #tpu.dot_dimension_numbers<[1], [0], [0], [1], [0, 0, 1, 1], [], []>} : vector<8x8xf32>, vector<8x8xf32>, vector<8x8xf32> -> vector<8x8xf32>
    %37 = vector.extract_strided_slice %10 {offsets = [0, 8], sizes = [8, 8], strides = [1, 1]} : vector<8x32xf32> to vector<8x8xf32>
    %38 = vector.extract_strided_slice %16 {offsets = [0, 8], sizes = [8, 8], strides = [1, 1]} : vector<8x32xf32> to vector<8x8xf32>
    %39 = vector.extract_strided_slice %17 {offsets = [0, 8], sizes = [8, 8], strides = [1, 1]} : vector<8x32xf32> to vector<8x8xf32>
    %cst_25 = arith.constant dense<0.000000e+00> : vector<8x8xf32>
    %40 = tpu.matmul %37, %38, %cst_25 {dimension_numbers = #tpu.dot_dimension_numbers<[1], [1], [0], [0], [0, 0, 1, 0], [], []>} : vector<8x8xf32>, vector<8x8xf32>, vector<8x8xf32> -> vector<8x8xf32>
    %41 = vector.broadcast %19 : vector<1x8xf32> to vector<8x8xf32>
    %42 = arith.addf %40, %41 : vector<8x8xf32>
    %cst_26 = arith.constant dense<0xFF800000> : vector<8xf32>
    %43 = vector.multi_reduction <maximumf>, %42, %cst_26 [1] : vector<8x8xf32> to vector<8xf32>
    %44 = vector.shape_cast %43 : vector<8xf32> to vector<8x1xf32>
    %45 = vector.broadcast %44 : vector<8x1xf32> to vector<8x8xf32>
    %46 = arith.subf %42, %45 : vector<8x8xf32>
    %47 = math.exp %46 : vector<8x8xf32>
    %cst_27 = arith.constant dense<0.000000e+00> : vector<8xf32>
    %48 = vector.multi_reduction <add>, %47, %cst_27 [1] : vector<8x8xf32> to vector<8xf32>
    %49 = vector.shape_cast %48 : vector<8xf32> to vector<8x1xf32>
    %50 = tpu.reciprocal %49 {approx = true} : vector<8x1xf32> -> vector<8x1xf32>
    %51 = vector.broadcast %50 : vector<8x1xf32> to vector<8x8xf32>
    %52 = arith.mulf %47, %51 : vector<8x8xf32>
    %cst_28 = arith.constant dense<0.000000e+00> : vector<8x8xf32>
    %53 = tpu.matmul %52, %39, %cst_28 {dimension_numbers = #tpu.dot_dimension_numbers<[1], [0], [0], [1], [0, 0, 1, 1], [], []>} : vector<8x8xf32>, vector<8x8xf32>, vector<8x8xf32> -> vector<8x8xf32>
    %54 = vector.extract_strided_slice %10 {offsets = [0, 16], sizes = [8, 8], strides = [1, 1]} : vector<8x32xf32> to vector<8x8xf32>
    %55 = vector.extract_strided_slice %16 {offsets = [0, 16], sizes = [8, 8], strides = [1, 1]} : vector<8x32xf32> to vector<8x8xf32>
    %56 = vector.extract_strided_slice %17 {offsets = [0, 16], sizes = [8, 8], strides = [1, 1]} : vector<8x32xf32> to vector<8x8xf32>
    %cst_29 = arith.constant dense<0.000000e+00> : vector<8x8xf32>
    %57 = tpu.matmul %54, %55, %cst_29 {dimension_numbers = #tpu.dot_dimension_numbers<[1], [1], [0], [0], [0, 0, 1, 0], [], []>} : vector<8x8xf32>, vector<8x8xf32>, vector<8x8xf32> -> vector<8x8xf32>
    %58 = vector.broadcast %19 : vector<1x8xf32> to vector<8x8xf32>
    %59 = arith.addf %57, %58 : vector<8x8xf32>
    %cst_30 = arith.constant dense<0xFF800000> : vector<8xf32>
    %60 = vector.multi_reduction <maximumf>, %59, %cst_30 [1] : vector<8x8xf32> to vector<8xf32>
    %61 = vector.shape_cast %60 : vector<8xf32> to vector<8x1xf32>
    %62 = vector.broadcast %61 : vector<8x1xf32> to vector<8x8xf32>
    %63 = arith.subf %59, %62 : vector<8x8xf32>
    %64 = math.exp %63 : vector<8x8xf32>
    %cst_31 = arith.constant dense<0.000000e+00> : vector<8xf32>
    %65 = vector.multi_reduction <add>, %64, %cst_31 [1] : vector<8x8xf32> to vector<8xf32>
    %66 = vector.shape_cast %65 : vector<8xf32> to vector<8x1xf32>
    %67 = tpu.reciprocal %66 {approx = true} : vector<8x1xf32> -> vector<8x1xf32>
    %68 = vector.broadcast %67 : vector<8x1xf32> to vector<8x8xf32>
    %69 = arith.mulf %64, %68 : vector<8x8xf32>
    %cst_32 = arith.constant dense<0.000000e+00> : vector<8x8xf32>
    %70 = tpu.matmul %69, %56, %cst_32 {dimension_numbers = #tpu.dot_dimension_numbers<[1], [0], [0], [1], [0, 0, 1, 1], [], []>} : vector<8x8xf32>, vector<8x8xf32>, vector<8x8xf32> -> vector<8x8xf32>
    %71 = vector.extract_strided_slice %10 {offsets = [0, 24], sizes = [8, 8], strides = [1, 1]} : vector<8x32xf32> to vector<8x8xf32>
    %72 = vector.extract_strided_slice %16 {offsets = [0, 24], sizes = [8, 8], strides = [1, 1]} : vector<8x32xf32> to vector<8x8xf32>
    %73 = vector.extract_strided_slice %17 {offsets = [0, 24], sizes = [8, 8], strides = [1, 1]} : vector<8x32xf32> to vector<8x8xf32>
    %cst_33 = arith.constant dense<0.000000e+00> : vector<8x8xf32>
    %74 = tpu.matmul %71, %72, %cst_33 {dimension_numbers = #tpu.dot_dimension_numbers<[1], [1], [0], [0], [0, 0, 1, 0], [], []>} : vector<8x8xf32>, vector<8x8xf32>, vector<8x8xf32> -> vector<8x8xf32>
    %75 = vector.broadcast %19 : vector<1x8xf32> to vector<8x8xf32>
    %76 = arith.addf %74, %75 : vector<8x8xf32>
    %cst_34 = arith.constant dense<0xFF800000> : vector<8xf32>
    %77 = vector.multi_reduction <maximumf>, %76, %cst_34 [1] : vector<8x8xf32> to vector<8xf32>
    %78 = vector.shape_cast %77 : vector<8xf32> to vector<8x1xf32>
    %79 = vector.broadcast %78 : vector<8x1xf32> to vector<8x8xf32>
    %80 = arith.subf %76, %79 : vector<8x8xf32>
    %81 = math.exp %80 : vector<8x8xf32>
    %cst_35 = arith.constant dense<0.000000e+00> : vector<8xf32>
    %82 = vector.multi_reduction <add>, %81, %cst_35 [1] : vector<8x8xf32> to vector<8xf32>
    %83 = vector.shape_cast %82 : vector<8xf32> to vector<8x1xf32>
    %84 = tpu.reciprocal %83 {approx = true} : vector<8x1xf32> -> vector<8x1xf32>
    %85 = vector.broadcast %84 : vector<8x1xf32> to vector<8x8xf32>
    %86 = arith.mulf %81, %85 : vector<8x8xf32>
    %cst_36 = arith.constant dense<0.000000e+00> : vector<8x8xf32>
    %87 = tpu.matmul %86, %73, %cst_36 {dimension_numbers = #tpu.dot_dimension_numbers<[1], [0], [0], [1], [0, 0, 1, 1], [], []>} : vector<8x8xf32>, vector<8x8xf32>, vector<8x8xf32> -> vector<8x8xf32>
    %88 = tpu.concatenate %36, %53, %70, %87 in 1 : vector<8x8xf32>, vector<8x8xf32>, vector<8x8xf32>, vector<8x8xf32> -> vector<8x32xf32>
    %c0_37 = arith.constant 0 : index
    %c0_38 = arith.constant 0 : index
    %89 = vector.load %arg8[%c0_37, %c0_38] : memref<32x32xf32, #tpu.memory_space<vmem>>, vector<32x32xf32>
    %cst_39 = arith.constant dense<0.000000e+00> : vector<8x32xf32>
    %90 = tpu.matmul %88, %89, %cst_39 {dimension_numbers = #tpu.dot_dimension_numbers<[1], [0], [0], [1], [0, 0, 1, 1], [], []>} : vector<8x32xf32>, vector<32x32xf32>, vector<8x32xf32> -> vector<8x32xf32>
    %c0_40 = arith.constant 0 : index
    %c0_41 = arith.constant 0 : index
    %91 = vector.load %arg9[%c0_40, %c0_41] : memref<1x32xf32, #tpu.memory_space<vmem>>, vector<1x32xf32>
    %92 = vector.broadcast %91 : vector<1x32xf32> to vector<8x32xf32>
    %93 = arith.addf %90, %92 : vector<8x32xf32>
    %94 = arith.addf %93, %1 : vector<8x32xf32>
    %cst_42 = arith.constant dense<0.000000e+00> : vector<8xf32>
    %95 = vector.multi_reduction <add>, %94, %cst_42 [1] : vector<8x32xf32> to vector<8xf32>
    %96 = vector.shape_cast %95 : vector<8xf32> to vector<8x1xf32>
    %cst_43 = arith.constant 3.200000e+01 : f32
    %97 = vector.broadcast %cst_43 : f32 to vector<8x1xf32>
    %98 = arith.divf %96, %97 : vector<8x1xf32>
    %99 = vector.broadcast %98 : vector<8x1xf32> to vector<8x32xf32>
    %100 = arith.subf %94, %99 : vector<8x32xf32>
    %101 = arith.mulf %100, %100 : vector<8x32xf32>
    %cst_44 = arith.constant dense<0.000000e+00> : vector<8xf32>
    %102 = vector.multi_reduction <add>, %101, %cst_44 [1] : vector<8x32xf32> to vector<8xf32>
    %103 = vector.shape_cast %102 : vector<8xf32> to vector<8x1xf32>
    %cst_45 = arith.constant 3.200000e+01 : f32
    %104 = vector.broadcast %cst_45 : f32 to vector<8x1xf32>
    %105 = arith.divf %103, %104 : vector<8x1xf32>
    %106 = vector.broadcast %98 : vector<8x1xf32> to vector<8x32xf32>
    %107 = arith.subf %94, %106 : vector<8x32xf32>
    %cst_46 = arith.constant 9.99999974E-6 : f32
    %108 = vector.broadcast %cst_46 : f32 to vector<8x1xf32>
    %109 = arith.addf %105, %108 : vector<8x1xf32>
    %110 = math.rsqrt %109 : vector<8x1xf32>
    %111 = vector.broadcast %110 : vector<8x1xf32> to vector<8x32xf32>
    %112 = arith.mulf %107, %111 : vector<8x32xf32>
    %113 = vector.broadcast %4 : vector<1x32xf32> to vector<8x32xf32>
    %114 = arith.mulf %112, %113 : vector<8x32xf32>
    %115 = vector.broadcast %5 : vector<1x32xf32> to vector<8x32xf32>
    %116 = arith.addf %114, %115 : vector<8x32xf32>
    %c0_47 = arith.constant 0 : index
    %c0_48 = arith.constant 0 : index
    %117 = vector.load %arg16[%c0_47, %c0_48] : memref<1x32xf32, #tpu.memory_space<vmem>>, vector<1x32xf32>
    %c0_49 = arith.constant 0 : index
    %c0_50 = arith.constant 0 : index
    %118 = vector.load %arg17[%c0_49, %c0_50] : memref<1x32xf32, #tpu.memory_space<vmem>>, vector<1x32xf32>
    %c0_51 = arith.constant 0 : index
    %c0_52 = arith.constant 0 : index
    %119 = vector.load %arg12[%c0_51, %c0_52] : memref<32x64xf32, #tpu.memory_space<vmem>>, vector<32x64xf32>
    %cst_53 = arith.constant dense<0.000000e+00> : vector<8x64xf32>
    %120 = tpu.matmul %116, %119, %cst_53 {dimension_numbers = #tpu.dot_dimension_numbers<[1], [0], [0], [1], [0, 0, 1, 1], [], []>} : vector<8x32xf32>, vector<32x64xf32>, vector<8x64xf32> -> vector<8x64xf32>
    %c0_54 = arith.constant 0 : index
    %c0_55 = arith.constant 0 : index
    %121 = vector.load %arg13[%c0_54, %c0_55] : memref<1x64xf32, #tpu.memory_space<vmem>>, vector<1x64xf32>
    %122 = vector.broadcast %121 : vector<1x64xf32> to vector<8x64xf32>
    %123 = arith.addf %120, %122 : vector<8x64xf32>
    %cst_56 = arith.constant 0.000000e+00 : f32
    %124 = vector.broadcast %cst_56 : f32 to vector<8x64xf32>
    %125 = arith.maximumf %123, %124 : vector<8x64xf32>
    %c0_57 = arith.constant 0 : index
    %c0_58 = arith.constant 0 : index
    %126 = vector.load %arg14[%c0_57, %c0_58] : memref<64x32xf32, #tpu.memory_space<vmem>>, vector<64x32xf32>
    %cst_59 = arith.constant dense<0.000000e+00> : vector<8x32xf32>
    %127 = tpu.matmul %125, %126, %cst_59 {dimension_numbers = #tpu.dot_dimension_numbers<[1], [0], [0], [1], [0, 0, 1, 1], [], []>} : vector<8x64xf32>, vector<64x32xf32>, vector<8x32xf32> -> vector<8x32xf32>
    %c0_60 = arith.constant 0 : index
    %c0_61 = arith.constant 0 : index
    %128 = vector.load %arg15[%c0_60, %c0_61] : memref<1x32xf32, #tpu.memory_space<vmem>>, vector<1x32xf32>
    %129 = vector.broadcast %128 : vector<1x32xf32> to vector<8x32xf32>
    %130 = arith.addf %127, %129 : vector<8x32xf32>
    %131 = arith.addf %130, %116 : vector<8x32xf32>
    %cst_62 = arith.constant dense<0.000000e+00> : vector<8xf32>
    %132 = vector.multi_reduction <add>, %131, %cst_62 [1] : vector<8x32xf32> to vector<8xf32>
    %133 = vector.shape_cast %132 : vector<8xf32> to vector<8x1xf32>
    %cst_63 = arith.constant 3.200000e+01 : f32
    %134 = vector.broadcast %cst_63 : f32 to vector<8x1xf32>
    %135 = arith.divf %133, %134 : vector<8x1xf32>
    %136 = vector.broadcast %135 : vector<8x1xf32> to vector<8x32xf32>
    %137 = arith.subf %131, %136 : vector<8x32xf32>
    %138 = arith.mulf %137, %137 : vector<8x32xf32>
    %cst_64 = arith.constant dense<0.000000e+00> : vector<8xf32>
    %139 = vector.multi_reduction <add>, %138, %cst_64 [1] : vector<8x32xf32> to vector<8xf32>
    %140 = vector.shape_cast %139 : vector<8xf32> to vector<8x1xf32>
    %cst_65 = arith.constant 3.200000e+01 : f32
    %141 = vector.broadcast %cst_65 : f32 to vector<8x1xf32>
    %142 = arith.divf %140, %141 : vector<8x1xf32>
    %143 = vector.broadcast %135 : vector<8x1xf32> to vector<8x32xf32>
    %144 = arith.subf %131, %143 : vector<8x32xf32>
    %cst_66 = arith.constant 9.99999974E-6 : f32
    %145 = vector.broadcast %cst_66 : f32 to vector<8x1xf32>
    %146 = arith.addf %142, %145 : vector<8x1xf32>
    %147 = math.rsqrt %146 : vector<8x1xf32>
    %148 = vector.broadcast %147 : vector<8x1xf32> to vector<8x32xf32>
    %149 = arith.mulf %144, %148 : vector<8x32xf32>
    %150 = vector.broadcast %117 : vector<1x32xf32> to vector<8x32xf32>
    %151 = arith.mulf %149, %150 : vector<8x32xf32>
    %152 = vector.broadcast %118 : vector<1x32xf32> to vector<8x32xf32>
    %153 = arith.addf %151, %152 : vector<8x32xf32>
    %c0_67 = arith.constant 0 : index
    %c0_68 = arith.constant 0 : index
    %c0_69 = arith.constant 0 : index
    %154 = vector.load %arg18[%c0_67, %c0_68, %c0_69] : memref<1x8x32xf32, #tpu.memory_space<vmem>>, vector<1x8x32xf32>
    %155 = vector.shape_cast %154 : vector<1x8x32xf32> to vector<8x32xf32>
    %156 = vector.shape_cast %153 : vector<8x32xf32> to vector<1x8x32xf32>
    tpu.vector_store %arg18[%c0_67, %c0_68, %c0_69], %156 {strides = array<i32>} : memref<1x8x32xf32, #tpu.memory_space<vmem>>, vector<1x8x32xf32>,
    return
  }
  func.func @transform_0(%arg0: i32) -> (i32, i32, i32) {
    %c0_i32 = arith.constant 0 : i32
    %c0_i32_0 = arith.constant 0 : i32
    %c0_i32_1 = arith.constant 0 : i32
    return %arg0, %c0_i32, %c0_i32_0 : i32, i32, i32
  }
  func.func @transform_1(%arg0: i32) -> (i32, i32, i32) {
    %c0_i32 = arith.constant 0 : i32
    %c0_i32_0 = arith.constant 0 : i32
    %c0_i32_1 = arith.constant 0 : i32
    return %arg0, %c0_i32, %c0_i32_0 : i32, i32, i32
  }
  func.func @transform_2(%arg0: i32) -> (i32, i32, i32) {
    %c0_i32 = arith.constant 0 : i32
    %c0_i32_0 = arith.constant 0 : i32
    %c0_i32_1 = arith.constant 0 : i32
    return %arg0, %c0_i32, %c0_i32_0 : i32, i32, i32
  }
  func.func @transform_3(%arg0: i32) -> (i32, i32) {
    %c0_i32 = arith.constant 0 : i32
    %c0_i32_0 = arith.constant 0 : i32
    %c0_i32_1 = arith.constant 0 : i32
    return %c0_i32, %c0_i32_0 : i32, i32
  }
  func.func @transform_4(%arg0: i32) -> (i32, i32) {
    %c0_i32 = arith.constant 0 : i32
    %c0_i32_0 = arith.constant 0 : i32
    %c0_i32_1 = arith.constant 0 : i32
    return %c0_i32, %c0_i32_0 : i32, i32
  }
  func.func @transform_5(%arg0: i32) -> (i32, i32) {
    %c0_i32 = arith.constant 0 : i32
    %c0_i32_0 = arith.constant 0 : i32
    %c0_i32_1 = arith.constant 0 : i32
    return %c0_i32, %c0_i32_0 : i32, i32
  }
  func.func @transform_6(%arg0: i32) -> (i32, i32) {
    %c0_i32 = arith.constant 0 : i32
    %c0_i32_0 = arith.constant 0 : i32
    %c0_i32_1 = arith.constant 0 : i32
    return %c0_i32, %c0_i32_0 : i32, i32
  }
  func.func @transform_7(%arg0: i32) -> (i32, i32) {
    %c0_i32 = arith.constant 0 : i32
    %c0_i32_0 = arith.constant 0 : i32
    %c0_i32_1 = arith.constant 0 : i32
    return %c0_i32, %c0_i32_0 : i32, i32
  }
  func.func @transform_8(%arg0: i32) -> (i32, i32) {
    %c0_i32 = arith.constant 0 : i32
    %c0_i32_0 = arith.constant 0 : i32
    %c0_i32_1 = arith.constant 0 : i32
    return %c0_i32, %c0_i32_0 : i32, i32
  }
  func.func @transform_9(%arg0: i32) -> (i32, i32) {
    %c0_i32 = arith.constant 0 : i32
    %c0_i32_0 = arith.constant 0 : i32
    %c0_i32_1 = arith.constant 0 : i32
    return %c0_i32, %c0_i32_0 : i32, i32
  }
  func.func @transform_10(%arg0: i32) -> (i32, i32) {
    %c0_i32 = arith.constant 0 : i32
    %c0_i32_0 = arith.constant 0 : i32
    %c0_i32_1 = arith.constant 0 : i32
    return %c0_i32, %c0_i32_0 : i32, i32
  }
  func.func @transform_11(%arg0: i32) -> (i32, i32) {
    %c0_i32 = arith.constant 0 : i32
    %c0_i32_0 = arith.constant 0 : i32
    %c0_i32_1 = arith.constant 0 : i32
    return %c0_i32, %c0_i32_0 : i32, i32
  }
  func.func @transform_12(%arg0: i32) -> (i32, i32) {
    %c0_i32 = arith.constant 0 : i32
    %c0_i32_0 = arith.constant 0 : i32
    %c0_i32_1 = arith.constant 0 : i32
    return %c0_i32, %c0_i32_0 : i32, i32
  }
  func.func @transform_13(%arg0: i32) -> (i32, i32) {
    %c0_i32 = arith.constant 0 : i32
    %c0_i32_0 = arith.constant 0 : i32
    %c0_i32_1 = arith.constant 0 : i32
    return %c0_i32, %c0_i32_0 : i32, i32
  }
  func.func @transform_14(%arg0: i32) -> (i32, i32) {
    %c0_i32 = arith.constant 0 : i32
    %c0_i32_0 = arith.constant 0 : i32
    %c0_i32_1 = arith.constant 0 : i32
    return %c0_i32, %c0_i32_0 : i32, i32
  }
  func.func @transform_15(%arg0: i32) -> (i32, i32) {
    %c0_i32 = arith.constant 0 : i32
    %c0_i32_0 = arith.constant 0 : i32
    %c0_i32_1 = arith.constant 0 : i32
    return %c0_i32, %c0_i32_0 : i32, i32
  }
  func.func @transform_16(%arg0: i32) -> (i32, i32) {
    %c0_i32 = arith.constant 0 : i32
    %c0_i32_0 = arith.constant 0 : i32
    %c0_i32_1 = arith.constant 0 : i32
    return %c0_i32, %c0_i32_0 : i32, i32
  }
  func.func @transform_17(%arg0: i32) -> (i32, i32, i32) {
    %c0_i32 = arith.constant 0 : i32
    %c0_i32_0 = arith.constant 0 : i32
    %c0_i32_1 = arith.constant 0 : i32
    return %arg0, %c0_i32, %c0_i32_0 : i32, i32, i32
  }
}

</mosaic_0001>

<llo_original>
// kernel: transformer_immt_encoder_layer.1
$region0: #{transformer_immt_encoder_layer.1}
  #allocation0 [shape = 'u32[]', space=smem, size = 0x4, offset = 0x4, fixed_abs, tag = 'smem constant byte address 0x4 - core index']
  #allocation1 [shape = 'u32[144,128]{1,0:T(1,128)}', space=vmem, size = 0x12000, scoped, tag = 'internal scratch']
  %s0 = inlined_call_operand.vmem [shape: f32[2,8,32], index: 0, kind: input, shape index: {}]
  %s1 = inlined_call_operand.vmem [shape: f32[2,8,32], index: 1, kind: input, shape index: {}]
  %s2 = inlined_call_operand.vmem [shape: f32[2,1,8], index: 2, kind: input, shape index: {}]
  %s3 = inlined_call_operand.vmem [shape: f32[32,32], index: 3, kind: input, shape index: {}]
  %s4 = inlined_call_operand.vmem [shape: f32[1,32], index: 4, kind: input, shape index: {}]
  %s5 = inlined_call_operand.vmem [shape: f32[32,64], index: 5, kind: input, shape index: {}]
  %s6 = inlined_call_operand.vmem [shape: f32[1,64], index: 6, kind: input, shape index: {}]
  %s7 = inlined_call_operand.vmem [shape: f32[32,32], index: 7, kind: input, shape index: {}]
  %s8 = inlined_call_operand.vmem [shape: f32[1,32], index: 8, kind: input, shape index: {}]
  %s9 = inlined_call_operand.vmem [shape: f32[1,32], index: 9, kind: input, shape index: {}]
  %s10 = inlined_call_operand.vmem [shape: f32[1,32], index: 10, kind: input, shape index: {}]
  %s11 = inlined_call_operand.vmem [shape: f32[32,64], index: 11, kind: input, shape index: {}]
  %s12 = inlined_call_operand.vmem [shape: f32[1,64], index: 12, kind: input, shape index: {}]
  %s13 = inlined_call_operand.vmem [shape: f32[64,32], index: 13, kind: input, shape index: {}]
  %s14 = inlined_call_operand.vmem [shape: f32[1,32], index: 14, kind: input, shape index: {}]
  %s15 = inlined_call_operand.vmem [shape: f32[1,32], index: 15, kind: input, shape index: {}]
  %s16 = inlined_call_operand.vmem [shape: f32[1,32], index: 16, kind: input, shape index: {}]
  %s17 = inlined_call_operand.vmem [shape: f32[2,8,32], index: 17, kind: output, shape index: {}]
  %s18 = sld [smem:[#allocation0]]
  $region101: #{transformer_immt_encoder_layer.1} parent=0
    _
  %s20 = ssub.s32 1, %s18
  %s21 = scalar_select 0, %s20, %s18
  loop: start=0, step=1, limit=4
  $region2: #{transformer_immt_encoder_layer.1} parent=0 // loop_pre_header
    _
  $region3: #{transformer_immt_encoder_layer.1} parent=0 // loop_header
    %s23 = sphi 0, %s27
    %p24 = scmp.ge.s32.totalorder %s23, 4
    %s33 = sphi 0, %s35
    %s36 = sphi 0, %s33
    %s37 = sphi 0, %s36
    %s53 = sphi 0, %s37
    %s59 = sphi 0, %s61
    %s62 = sphi 0, %s59
    %s63 = sphi 0, %s62
    %s79 = sphi 0, %s63
    %s85 = sphi 0, %s87
    %s88 = sphi 0, %s85
    %s89 = sphi 0, %s88
    %s105 = sphi 0, %s89
    %s109 = sphi 0, %s109
    %s111 = sphi 0, %s109
    %s112 = sphi 0, %s111
    %s126 = sphi 0, %s112
    %s130 = sphi 0, %s130
    %s132 = sphi 0, %s130
    %s133 = sphi 0, %s132
    %s147 = sphi 0, %s133
    %s151 = sphi 0, %s151
    %s153 = sphi 0, %s151
    %s154 = sphi 0, %s153
    %s168 = sphi 0, %s154
    %s172 = sphi 0, %s172
    %s174 = sphi 0, %s172
    %s175 = sphi 0, %s174
    %s189 = sphi 0, %s175
    %s193 = sphi 0, %s193
    %s195 = sphi 0, %s193
    %s196 = sphi 0, %s195
    %s210 = sphi 0, %s196
    %s214 = sphi 0, %s214
    %s216 = sphi 0, %s214
    %s217 = sphi 0, %s216
    %s231 = sphi 0, %s217
    %s235 = sphi 0, %s235
    %s237 = sphi 0, %s235
    %s238 = sphi 0, %s237
    %s252 = sphi 0, %s238
    %s256 = sphi 0, %s256
    %s258 = sphi 0, %s256
    %s259 = sphi 0, %s258
    %s273 = sphi 0, %s259
    %s277 = sphi 0, %s277
    %s279 = sphi 0, %s277
    %s280 = sphi 0, %s279
    %s294 = sphi 0, %s280
    %s298 = sphi 0, %s298
    %s300 = sphi 0, %s298
    %s301 = sphi 0, %s300
    %s315 = sphi 0, %s301
    %s319 = sphi 0, %s319
    %s321 = sphi 0, %s319
    %s322 = sphi 0, %s321
    %s336 = sphi 0, %s322
    %s340 = sphi 0, %s340
    %s342 = sphi 0, %s340
    %s343 = sphi 0, %s342
    %s357 = sphi 0, %s343
    %s361 = sphi 0, %s361
    %s363 = sphi 0, %s361
    %s364 = sphi 0, %s363
    %s378 = sphi 0, %s364
    %s382 = sphi 0, %s382
    %s384 = sphi 0, %s382
    %s385 = sphi 0, %s384
    %s399 = sphi 0, %s385
    %s405 = sphi 0, %s407
    %s408 = sphi 0, %s405
    %s409 = sphi 0, %s408
    %s425 = sphi 0, %s409
  $region4: #{transformer_immt_encoder_layer.1} parent=0 // loop_header_branch
    %26 = sbr.rel (%p24) target = $region8
  $region5: #{transformer_immt_encoder_layer.1} parent=0 // loop_body
    %s28 = ssub.s32 %s23, 1
    %s29 = ssub.s32 %s23, 2
    %s30 = sadd.s32 %s23, 1
    %s31 = ssub.s32 %s23, %s30
    %p32 = scmp.eq.s32.totalorder %s31, 0
    %s34 = sadd.s32 %s33, 1
    %s35 = scalar_select %p32, %s33, %s34
    %p38 = pneg %p32
    %p39 = scmp.eq.s32.totalorder %s23, 1
    %p40 = por %p38, %p39
    %p41 = scmp.ne.s32.totalorder %s33, %s36
    %p42 = scmp.eq.s32.totalorder %s23, 0
    %p43 = por %p41, %p42
    %p44 = scmp.ne.s32.totalorder %s33, %s36
    %p45 = scmp.eq.s32.totalorder %s28, 1
    %p46 = por %p44, %p45
    %p47 = scmp.ne.s32.totalorder %s36, %s37
    %p48 = scmp.eq.s32.totalorder %s28, 0
    %p49 = por %p47, %p48
    %p50 = scmp.ne.s32.totalorder %s36, %s37
    %p51 = scmp.eq.s32.totalorder %s29, 1
    %p52 = por %p50, %p51
    %p54 = scmp.ne.s32.totalorder %s37, %s53
    %p55 = scmp.eq.s32.totalorder %s29, 0
    %p56 = por %p54, %p55
    %s57 = ssub.s32 %s23, %s30
    %p58 = scmp.eq.s32.totalorder %s57, 0
    %s60 = sadd.s32 %s59, 1
    %s61 = scalar_select %p58, %s59, %s60
    %p64 = pneg %p58
    %p65 = scmp.eq.s32.totalorder %s23, 1
    %p66 = por %p64, %p65
    %p67 = scmp.ne.s32.totalorder %s59, %s62
    %p68 = scmp.eq.s32.totalorder %s23, 0
    %p69 = por %p67, %p68
    %p70 = scmp.ne.s32.totalorder %s59, %s62
    %p71 = scmp.eq.s32.totalorder %s28, 1
    %p72 = por %p70, %p71
    %p73 = scmp.ne.s32.totalorder %s62, %s63
    %p74 = scmp.eq.s32.totalorder %s28, 0
    %p75 = por %p73, %p74
    %p76 = scmp.ne.s32.totalorder %s62, %s63
    %p77 = scmp.eq.s32.totalorder %s29, 1
    %p78 = por %p76, %p77
    %p80 = scmp.ne.s32.totalorder %s63, %s79
    %p81 = scmp.eq.s32.totalorder %s29, 0
    %p82 = por %p80, %p81
    %s83 = ssub.s32 %s23, %s30
    %p84 = scmp.eq.s32.totalorder %s83, 0
    %s86 = sadd.s32 %s85, 1
    %s87 = scalar_select %p84, %s85, %s86
    %p90 = pneg %p84
    %p91 = scmp.eq.s32.totalorder %s23, 1
    %p92 = por %p90, %p91
    %p93 = scmp.ne.s32.totalorder %s85, %s88
    %p94 = scmp.eq.s32.totalorder %s23, 0
    %p95 = por %p93, %p94
    %p96 = scmp.ne.s32.totalorder %s85, %s88
    %p97 = scmp.eq.s32.totalorder %s28, 1
    %p98 = por %p96, %p97
    %p99 = scmp.ne.s32.totalorder %s88, %s89
    %p100 = scmp.eq.s32.totalorder %s28, 0
    %p101 = por %p99, %p100
    %p102 = scmp.ne.s32.totalorder %s88, %s89
    %p103 = scmp.eq.s32.totalorder %s29, 1
    %p104 = por %p102, %p103
    %p106 = scmp.ne.s32.totalorder %s89, %s105
    %p107 = scmp.eq.s32.totalorder %s29, 0
    %p108 = por %p106, %p107
    %s110 = sadd.s32 %s109, 1
    %p113 = scmp.eq.s32.totalorder %s23, 1
    %p114 = scmp.ne.s32.totalorder %s109, %s111
    %p115 = scmp.eq.s32.totalorder %s23, 0
    %p116 = por %p114, %p115
    %p117 = scmp.ne.s32.totalorder %s109, %s111
    %p118 = scmp.eq.s32.totalorder %s28, 1
    %p119 = por %p117, %p118
    %p120 = scmp.ne.s32.totalorder %s111, %s112
    %p121 = scmp.eq.s32.totalorder %s28, 0
    %p122 = por %p120, %p121
    %p123 = scmp.ne.s32.totalorder %s111, %s112
    %p124 = scmp.eq.s32.totalorder %s29, 1
    %p125 = por %p123, %p124
    %p127 = scmp.ne.s32.totalorder %s112, %s126
    %p128 = scmp.eq.s32.totalorder %s29, 0
    %p129 = por %p127, %p128
    %s131 = sadd.s32 %s130, 1
    %p134 = scmp.eq.s32.totalorder %s23, 1
    %p135 = scmp.ne.s32.totalorder %s130, %s132
    %p136 = scmp.eq.s32.totalorder %s23, 0
    %p137 = por %p135, %p136
    %p138 = scmp.ne.s32.totalorder %s130, %s132
    %p139 = scmp.eq.s32.totalorder %s28, 1
    %p140 = por %p138, %p139
    %p141 = scmp.ne.s32.totalorder %s132, %s133
    %p142 = scmp.eq.s32.totalorder %s28, 0
    %p143 = por %p141, %p142
    %p144 = scmp.ne.s32.totalorder %s132, %s133
    %p145 = scmp.eq.s32.totalorder %s29, 1
    %p146 = por %p144, %p145
    %p148 = scmp.ne.s32.totalorder %s133, %s147
    %p149 = scmp.eq.s32.totalorder %s29, 0
    %p150 = por %p148, %p149
    %s152 = sadd.s32 %s151, 1
    %p155 = scmp.eq.s32.totalorder %s23, 1
    %p156 = scmp.ne.s32.totalorder %s151, %s153
    %p157 = scmp.eq.s32.totalorder %s23, 0
    %p158 = por %p156, %p157
    %p159 = scmp.ne.s32.totalorder %s151, %s153
    %p160 = scmp.eq.s32.totalorder %s28, 1
    %p161 = por %p159, %p160
    %p162 = scmp.ne.s32.totalorder %s153, %s154
    %p163 = scmp.eq.s32.totalorder %s28, 0
    %p164 = por %p162, %p163
    %p165 = scmp.ne.s32.totalorder %s153, %s154
    %p166 = scmp.eq.s32.totalorder %s29, 1
    %p167 = por %p165, %p166
    %p169 = scmp.ne.s32.totalorder %s154, %s168
    %p170 = scmp.eq.s32.totalorder %s29, 0
    %p171 = por %p169, %p170
    %s173 = sadd.s32 %s172, 1
    %p176 = scmp.eq.s32.totalorder %s23, 1
    %p177 = scmp.ne.s32.totalorder %s172, %s174
    %p178 = scmp.eq.s32.totalorder %s23, 0
    %p179 = por %p177, %p178
    %p180 = scmp.ne.s32.totalorder %s172, %s174
    %p181 = scmp.eq.s32.totalorder %s28, 1
    %p182 = por %p180, %p181
    %p183 = scmp.ne.s32.totalorder %s174, %s175
    %p184 = scmp.eq.s32.totalorder %s28, 0
    %p185 = por %p183, %p184
    %p186 = scmp.ne.s32.totalorder %s174, %s175
    %p187 = scmp.eq.s32.totalorder %s29, 1
    %p188 = por %p186, %p187
    %p190 = scmp.ne.s32.totalorder %s175, %s189
    %p191 = scmp.eq.s32.totalorder %s29, 0
    %p192 = por %p190, %p191
    %s194 = sadd.s32 %s193, 1
    %p197 = scmp.eq.s32.totalorder %s23, 1
    %p198 = scmp.ne.s32.totalorder %s193, %s195
    %p199 = scmp.eq.s32.totalorder %s23, 0
    %p200 = por %p198, %p199
    %p201 = scmp.ne.s32.totalorder %s193, %s195
    %p202 = scmp.eq.s32.totalorder %s28, 1
    %p203 = por %p201, %p202
    %p204 = scmp.ne.s32.totalorder %s195, %s196
    %p205 = scmp.eq.s32.totalorder %s28, 0
    %p206 = por %p204, %p205
    %p207 = scmp.ne.s32.totalorder %s195, %s196
    %p208 = scmp.eq.s32.totalorder %s29, 1
    %p209 = por %p207, %p208
    %p211 = scmp.ne.s32.totalorder %s196, %s210
    %p212 = scmp.eq.s32.totalorder %s29, 0
    %p213 = por %p211, %p212
    %s215 = sadd.s32 %s214, 1
    %p218 = scmp.eq.s32.totalorder %s23, 1
    %p219 = scmp.ne.s32.totalorder %s214, %s216
    %p220 = scmp.eq.s32.totalorder %s23, 0
    %p221 = por %p219, %p220
    %p222 = scmp.ne.s32.totalorder %s214, %s216
    %p223 = scmp.eq.s32.totalorder %s28, 1
    %p224 = por %p222, %p223
    %p225 = scmp.ne.s32.totalorder %s216, %s217
    %p226 = scmp.eq.s32.totalorder %s28, 0
    %p227 = por %p225, %p226
    %p228 = scmp.ne.s32.totalorder %s216, %s217
    %p229 = scmp.eq.s32.totalorder %s29, 1
    %p230 = por %p228, %p229
    %p232 = scmp.ne.s32.totalorder %s217, %s231
    %p233 = scmp.eq.s32.totalorder %s29, 0
    %p234 = por %p232, %p233
    %s236 = sadd.s32 %s235, 1
    %p239 = scmp.eq.s32.totalorder %s23, 1
    %p240 = scmp.ne.s32.totalorder %s235, %s237
    %p241 = scmp.eq.s32.totalorder %s23, 0
    %p242 = por %p240, %p241
    %p243 = scmp.ne.s32.totalorder %s235, %s237
    %p244 = scmp.eq.s32.totalorder %s28, 1
    %p245 = por %p243, %p244
    %p246 = scmp.ne.s32.totalorder %s237, %s238
    %p247 = scmp.eq.s32.totalorder %s28, 0
    %p248 = por %p246, %p247
    %p249 = scmp.ne.s32.totalorder %s237, %s238
    %p250 = scmp.eq.s32.totalorder %s29, 1
    %p251 = por %p249, %p250
    %p253 = scmp.ne.s32.totalorder %s238, %s252
    %p254 = scmp.eq.s32.totalorder %s29, 0
    %p255 = por %p253, %p254
    %s257 = sadd.s32 %s256, 1
    %p260 = scmp.eq.s32.totalorder %s23, 1
    %p261 = scmp.ne.s32.totalorder %s256, %s258
    %p262 = scmp.eq.s32.totalorder %s23, 0
    %p263 = por %p261, %p262
    %p264 = scmp.ne.s32.totalorder %s256, %s258
    %p265 = scmp.eq.s32.totalorder %s28, 1
    %p266 = por %p264, %p265
    %p267 = scmp.ne.s32.totalorder %s258, %s259
    %p268 = scmp.eq.s32.totalorder %s28, 0
    %p269 = por %p267, %p268
    %p270 = scmp.ne.s32.totalorder %s258, %s259
    %p271 = scmp.eq.s32.totalorder %s29, 1
    %p272 = por %p270, %p271
    %p274 = scmp.ne.s32.totalorder %s259, %s273
    %p275 = scmp.eq.s32.totalorder %s29, 0
    %p276 = por %p274, %p275
    %s278 = sadd.s32 %s277, 1
    %p281 = scmp.eq.s32.totalorder %s23, 1
    %p282 = scmp.ne.s32.totalorder %s277, %s279
    %p283 = scmp.eq.s32.totalorder %s23, 0
    %p284 = por %p282, %p283
    %p285 = scmp.ne.s32.totalorder %s277, %s279
    %p286 = scmp.eq.s32.totalorder %s28, 1
    %p287 = por %p285, %p286
    %p288 = scmp.ne.s32.totalorder %s279, %s280
    %p289 = scmp.eq.s32.totalorder %s28, 0
    %p290 = por %p288, %p289
    %p291 = scmp.ne.s32.totalorder %s279, %s280
    %p292 = scmp.eq.s32.totalorder %s29, 1
    %p293 = por %p291, %p292
    %p295 = scmp.ne.s32.totalorder %s280, %s294
    %p296 = scmp.eq.s32.totalorder %s29, 0
    %p297 = por %p295, %p296
    %s299 = sadd.s32 %s298, 1
    %p302 = scmp.eq.s32.totalorder %s23, 1
    %p303 = scmp.ne.s32.totalorder %s298, %s300
    %p304 = scmp.eq.s32.totalorder %s23, 0
    %p305 = por %p303, %p304
    %p306 = scmp.ne.s32.totalorder %s298, %s300
    %p307 = scmp.eq.s32.totalorder %s28, 1
    %p308 = por %p306, %p307
    %p309 = scmp.ne.s32.totalorder %s300, %s301
    %p310 = scmp.eq.s32.totalorder %s28, 0
    %p311 = por %p309, %p310
    %p312 = scmp.ne.s32.totalorder %s300, %s301
    %p313 = scmp.eq.s32.totalorder %s29, 1
    %p314 = por %p312, %p313
    %p316 = scmp.ne.s32.totalorder %s301, %s315
    %p317 = scmp.eq.s32.totalorder %s29, 0
    %p318 = por %p316, %p317
    %s320 = sadd.s32 %s319, 1
    %p323 = scmp.eq.s32.totalorder %s23, 1
    %p324 = scmp.ne.s32.totalorder %s319, %s321
    %p325 = scmp.eq.s32.totalorder %s23, 0
    %p326 = por %p324, %p325
    %p327 = scmp.ne.s32.totalorder %s319, %s321
    %p328 = scmp.eq.s32.totalorder %s28, 1
    %p329 = por %p327, %p328
    %p330 = scmp.ne.s32.totalorder %s321, %s322
    %p331 = scmp.eq.s32.totalorder %s28, 0
    %p332 = por %p330, %p331
    %p333 = scmp.ne.s32.totalorder %s321, %s322
    %p334 = scmp.eq.s32.totalorder %s29, 1
    %p335 = por %p333, %p334
    %p337 = scmp.ne.s32.totalorder %s322, %s336
    %p338 = scmp.eq.s32.totalorder %s29, 0
    %p339 = por %p337, %p338
    %s341 = sadd.s32 %s340, 1
    %p344 = scmp.eq.s32.totalorder %s23, 1
    %p345 = scmp.ne.s32.totalorder %s340, %s342
    %p346 = scmp.eq.s32.totalorder %s23, 0
    %p347 = por %p345, %p346
    %p348 = scmp.ne.s32.totalorder %s340, %s342
    %p349 = scmp.eq.s32.totalorder %s28, 1
    %p350 = por %p348, %p349
    %p351 = scmp.ne.s32.totalorder %s342, %s343
    %p352 = scmp.eq.s32.totalorder %s28, 0
    %p353 = por %p351, %p352
    %p354 = scmp.ne.s32.totalorder %s342, %s343
    %p355 = scmp.eq.s32.totalorder %s29, 1
    %p356 = por %p354, %p355
    %p358 = scmp.ne.s32.totalorder %s343, %s357
    %p359 = scmp.eq.s32.totalorder %s29, 0
    %p360 = por %p358, %p359
    %s362 = sadd.s32 %s361, 1
    %p365 = scmp.eq.s32.totalorder %s23, 1
    %p366 = scmp.ne.s32.totalorder %s361, %s363
    %p367 = scmp.eq.s32.totalorder %s23, 0
    %p368 = por %p366, %p367
    %p369 = scmp.ne.s32.totalorder %s361, %s363
    %p370 = scmp.eq.s32.totalorder %s28, 1
    %p371 = por %p369, %p370
    %p372 = scmp.ne.s32.totalorder %s363, %s364
    %p373 = scmp.eq.s32.totalorder %s28, 0
    %p374 = por %p372, %p373
    %p375 = scmp.ne.s32.totalorder %s363, %s364
    %p376 = scmp.eq.s32.totalorder %s29, 1
    %p377 = por %p375, %p376
    %p379 = scmp.ne.s32.totalorder %s364, %s378
    %p380 = scmp.eq.s32.totalorder %s29, 0
    %p381 = por %p379, %p380
    %s383 = sadd.s32 %s382, 1
    %p386 = scmp.eq.s32.totalorder %s23, 1
    %p387 = scmp.ne.s32.totalorder %s382, %s384
    %p388 = scmp.eq.s32.totalorder %s23, 0
    %p389 = por %p387, %p388
    %p390 = scmp.ne.s32.totalorder %s382, %s384
    %p391 = scmp.eq.s32.totalorder %s28, 1
    %p392 = por %p390, %p391
    %p393 = scmp.ne.s32.totalorder %s384, %s385
    %p394 = scmp.eq.s32.totalorder %s28, 0
    %p395 = por %p393, %p394
    %p396 = scmp.ne.s32.totalorder %s384, %s385
    %p397 = scmp.eq.s32.totalorder %s29, 1
    %p398 = por %p396, %p397
    %p400 = scmp.ne.s32.totalorder %s385, %s399
    %p401 = scmp.eq.s32.totalorder %s29, 0
    %p402 = por %p400, %p401
    %s403 = ssub.s32 %s23, %s30
    %p404 = scmp.eq.s32.totalorder %s403, 0
    %s406 = sadd.s32 %s405, 1
    %s407 = scalar_select %p404, %s405, %s406
    %p410 = pneg %p404
    %p411 = scmp.eq.s32.totalorder %s23, 1
    %p412 = por %p410, %p411
    %p413 = scmp.ne.s32.totalorder %s405, %s408
    %p414 = scmp.eq.s32.totalorder %s23, 0
    %p415 = por %p413, %p414
    %p416 = scmp.ne.s32.totalorder %s405, %s408
    %p417 = scmp.eq.s32.totalorder %s28, 1
    %p418 = por %p416, %p417
    %p419 = scmp.ne.s32.totalorder %s408, %s409
    %p420 = scmp.eq.s32.totalorder %s28, 0
    %p421 = por %p419, %p420
    %p422 = scmp.ne.s32.totalorder %s408, %s409
    %p423 = scmp.eq.s32.totalorder %s29, 1
    %p424 = por %p422, %p423
    %p426 = scmp.ne.s32.totalorder %s409, %s425
    %p427 = scmp.eq.s32.totalorder %s29, 0
    %p428 = por %p426, %p427
    %p429 = scmp.le.s32.totalorder 1, %s23
    %p430 = scmp.lt.s32.totalorder %s23, 3
    %p431 = pnand %p429, %p430
    %p432 = pneg %p431
    // Predicated region
    $region9: #{transformer_immt_encoder_layer.1} parent=5 // pred_check
      _
    $region10: #{transformer_immt_encoder_layer.1} parent=5 // pred_check_branch
      %434 = sbr.rel (%p431) target = $region12
    $region11: #{transformer_immt_encoder_layer.1} parent=5 // pred_region
      %s435 = ssub.s32 %s23, 1
      // Predicated region
      $region13: #{transformer_immt_encoder_layer.1} parent=11 // pred_check
        %p436 = pneg %p122
      $region14: #{transformer_immt_encoder_layer.1} parent=11 // pred_check_branch
        %438 = sbr.rel (%p436) target = $region16
      $region15: #{transformer_immt_encoder_layer.1} parent=11 // pred_region
        _
      $region16: #{transformer_immt_encoder_layer.1} parent=11 // pred_fallthru
        _
      // Predicated region
      $region17: #{transformer_immt_encoder_layer.1} parent=11 // pred_check
        %p439 = pneg %p143
      $region18: #{transformer_immt_encoder_layer.1} parent=11 // pred_check_branch
        %441 = sbr.rel (%p439) target = $region20
      $region19: #{transformer_immt_encoder_layer.1} parent=11 // pred_region
        _
      $region20: #{transformer_immt_encoder_layer.1} parent=11 // pred_fallthru
        _
      // Predicated region
      $region21: #{transformer_immt_encoder_layer.1} parent=11 // pred_check
        %p442 = pneg %p164
      $region22: #{transformer_immt_encoder_layer.1} parent=11 // pred_check_branch
        %444 = sbr.rel (%p442) target = $region24
      $region23: #{transformer_immt_encoder_layer.1} parent=11 // pred_region
        _
      $region24: #{transformer_immt_encoder_layer.1} parent=11 // pred_fallthru
        _
      // Predicated region
      $region25: #{transformer_immt_encoder_layer.1} parent=11 // pred_check
        %p445 = pneg %p185
      $region26: #{transformer_immt_encoder_layer.1} parent=11 // pred_check_branch
        %447 = sbr.rel (%p445) target = $region28
      $region27: #{transformer_immt_encoder_layer.1} parent=11 // pred_region
        _
      $region28: #{transformer_immt_encoder_layer.1} parent=11 // pred_fallthru
        _
      // Predicated region
      $region29: #{transformer_immt_encoder_layer.1} parent=11 // pred_check
        %p448 = pneg %p206
      $region30: #{transformer_immt_encoder_layer.1} parent=11 // pred_check_branch
        %450 = sbr.rel (%p448) target = $region32
      $region31: #{transformer_immt_encoder_layer.1} parent=11 // pred_region
        _
      $region32: #{transformer_immt_encoder_layer.1} parent=11 // pred_fallthru
        _
      // Predicated region
      $region33: #{transformer_immt_encoder_layer.1} parent=11 // pred_check
        %p451 = pneg %p227
      $region34: #{transformer_immt_encoder_layer.1} parent=11 // pred_check_branch
        %453 = sbr.rel (%p451) target = $region36
      $region35: #{transformer_immt_encoder_layer.1} parent=11 // pred_region
        _
      $region36: #{transformer_immt_encoder_layer.1} parent=11 // pred_fallthru
        _
      // Predicated region
      $region37: #{transformer_immt_encoder_layer.1} parent=11 // pred_check
        %p454 = pneg %p248
      $region38: #{transformer_immt_encoder_layer.1} parent=11 // pred_check_branch
        %456 = sbr.rel (%p454) target = $region40
      $region39: #{transformer_immt_encoder_layer.1} parent=11 // pred_region
        _
      $region40: #{transformer_immt_encoder_layer.1} parent=11 // pred_fallthru
        _
      // Predicated region
      $region41: #{transformer_immt_encoder_layer.1} parent=11 // pred_check
        %p457 = pneg %p269
      $region42: #{transformer_immt_encoder_layer.1} parent=11 // pred_check_branch
        %459 = sbr.rel (%p457) target = $region44
      $region43: #{transformer_immt_encoder_layer.1} parent=11 // pred_region
        _
      $region44: #{transformer_immt_encoder_layer.1} parent=11 // pred_fallthru
        _
      // Predicated region
      $region45: #{transformer_immt_encoder_layer.1} parent=11 // pred_check
        %p460 = pneg %p290
      $region46: #{transformer_immt_encoder_layer.1} parent=11 // pred_check_branch
        %462 = sbr.rel (%p460) target = $region48
      $region47: #{transformer_immt_encoder_layer.1} parent=11 // pred_region
        _
      $region48: #{transformer_immt_encoder_layer.1} parent=11 // pred_fallthru
        _
      // Predicated region
      $region49: #{transformer_immt_encoder_layer.1} parent=11 // pred_check
        %p463 = pneg %p311
      $region50: #{transformer_immt_encoder_layer.1} parent=11 // pred_check_branch
        %465 = sbr.rel (%p463) target = $region52
      $region51: #{transformer_immt_encoder_layer.1} parent=11 // pred_region
        _
      $region52: #{transformer_immt_encoder_layer.1} parent=11 // pred_fallthru
        _
      // Predicated region
      $region53: #{transformer_immt_encoder_layer.1} parent=11 // pred_check
        %p466 = pneg %p332
      $region54: #{transformer_immt_encoder_layer.1} parent=11 // pred_check_branch
        %468 = sbr.rel (%p466) target = $region56
      $region55: #{transformer_immt_encoder_layer.1} parent=11 // pred_region
        _
      $region56: #{transformer_immt_encoder_layer.1} parent=11 // pred_fallthru
        _
      // Predicated region
      $region57: #{transformer_immt_encoder_layer.1} parent=11 // pred_check
        %p469 = pneg %p353
      $region58: #{transformer_immt_encoder_layer.1} parent=11 // pred_check_branch
        %471 = sbr.rel (%p469) target = $region60
      $region59: #{transformer_immt_encoder_layer.1} parent=11 // pred_region
        _
      $region60: #{transformer_immt_encoder_layer.1} parent=11 // pred_fallthru
        _
      // Predicated region
      $region61: #{transformer_immt_encoder_layer.1} parent=11 // pred_check
        %p472 = pneg %p374
      $region62: #{transformer_immt_encoder_layer.1} parent=11 // pred_check_branch
        %474 = sbr.rel (%p472) target = $region64
      $region63: #{transformer_immt_encoder_layer.1} parent=11 // pred_region
        _
      $region64: #{transformer_immt_encoder_layer.1} parent=11 // pred_fallthru
        _
      // Predicated region
      $region65: #{transformer_immt_encoder_layer.1} parent=11 // pred_check
        %p475 = pneg %p395
      $region66: #{transformer_immt_encoder_layer.1} parent=11 // pred_check_branch
        %477 = sbr.rel (%p475) target = $region68
      $region67: #{transformer_immt_encoder_layer.1} parent=11 // pred_region
        _
      $region68: #{transformer_immt_encoder_layer.1} parent=11 // pred_fallthru
        _
    $region12: #{transformer_immt_encoder_layer.1} parent=5 // pred_fallthru
      _
    %p478 = scmp.lt.s32.totalorder %s23, 2
    // Predicated region
    $region69: #{transformer_immt_encoder_layer.1} parent=5 // pred_check
      %p479 = pneg %p478
    $region70: #{transformer_immt_encoder_layer.1} parent=5 // pred_check_branch
      %481 = sbr.rel (%p479) target = $region72
    $region71: #{transformer_immt_encoder_layer.1} parent=5 // pred_region
      // Predicated region
      $region73: #{transformer_immt_encoder_layer.1} parent=71 // pred_check
        %p482 = pneg %p43
      $region74: #{transformer_immt_encoder_layer.1} parent=71 // pred_check_branch
        %484 = sbr.rel (%p482) target = $region76
      $region75: #{transformer_immt_encoder_layer.1} parent=71 // pred_region
        %p485 = scmp.lt.s32.totalorder %s23, 1
        %s486 = scalar_select %p485, %s23, 1
        %s487 = smul.addr %s486, 8
        %s488 = scalar_lea.vmem %s0, %s487
      $region76: #{transformer_immt_encoder_layer.1} parent=71 // pred_fallthru
        _
      // Predicated region
      $region77: #{transformer_immt_encoder_layer.1} parent=71 // pred_check
        %p489 = pneg %p69
      $region78: #{transformer_immt_encoder_layer.1} parent=71 // pred_check_branch
        %491 = sbr.rel (%p489) target = $region80
      $region79: #{transformer_immt_encoder_layer.1} parent=71 // pred_region
        %p492 = scmp.lt.s32.totalorder %s23, 1
        %s493 = scalar_select %p492, %s23, 1
        %s494 = smul.addr %s493, 8
        %s495 = scalar_lea.vmem %s1, %s494
      $region80: #{transformer_immt_encoder_layer.1} parent=71 // pred_fallthru
        _
      // Predicated region
      $region81: #{transformer_immt_encoder_layer.1} parent=71 // pred_check
        %p496 = pneg %p95
      $region82: #{transformer_immt_encoder_layer.1} parent=71 // pred_check_branch
        %498 = sbr.rel (%p496) target = $region84
      $region83: #{transformer_immt_encoder_layer.1} parent=71 // pred_region
        %p499 = scmp.lt.s32.totalorder %s23, 1
        %s500 = scalar_select %p499, %s23, 1
        %s501 = scalar_lea.vmem %s2, %s500
      $region84: #{transformer_immt_encoder_layer.1} parent=71 // pred_fallthru
        _
    $region72: #{transformer_immt_encoder_layer.1} parent=5 // pred_fallthru
      _
    %p502 = scmp.le.s32.totalorder 1, %s23
    %p503 = scmp.lt.s32.totalorder %s23, 3
    %p504 = pnand %p502, %p503
    %p505 = pneg %p504
    // Predicated region
    $region85: #{transformer_immt_encoder_layer.1} parent=5 // pred_check
      _
    $region86: #{transformer_immt_encoder_layer.1} parent=5 // pred_check_branch
      %507 = sbr.rel (%p504) target = $region88
    $region87: #{transformer_immt_encoder_layer.1} parent=5 // pred_region
      %s508 = ssub.s32 %s23, 1
      %p509 = scmp.lt.s32.totalorder %s28, 1
      %s510 = scalar_select %p509, %s28, 1
      %s511 = smul.addr %s510, 8
      %s512 = scalar_lea.vmem %s0, %s511
      %p513 = pneg %p49
      %p514 = pneg %p46
      %p515 = scmp.lt.s32.totalorder %s28, 1
      %s516 = scalar_select %p515, %s28, 1
      %s517 = smul.addr %s516, 8
      %s518 = scalar_lea.vmem %s1, %s517
      %p519 = pneg %p75
      %p520 = pneg %p72
      %p521 = scmp.lt.s32.totalorder %s28, 1
      %s522 = scalar_select %p521, %s28, 1
      %s523 = scalar_lea.vmem %s2, %s522
      %p524 = pneg %p101
      %p525 = pneg %p98
      %p526 = pneg %p122
      %p527 = pneg %p119
      %p528 = pneg %p143
      %p529 = pneg %p140
      %p530 = pneg %p164
      %p531 = pneg %p161
      %p532 = pneg %p185
      %p533 = pneg %p182
      %p534 = pneg %p206
      %p535 = pneg %p203
      %p536 = pneg %p227
      %p537 = pneg %p224
      %p538 = pneg %p248
      %p539 = pneg %p245
      %p540 = pneg %p269
      %p541 = pneg %p266
      %p542 = pneg %p290
      %p543 = pneg %p287
      %p544 = pneg %p311
      %p545 = pneg %p308
      %p546 = pneg %p332
      %p547 = pneg %p329
      %p548 = pneg %p353
      %p549 = pneg %p350
      %p550 = pneg %p374
      %p551 = pneg %p371
      %p552 = pneg %p395
      %p553 = pneg %p392
      %p554 = pneg %p421
      %p555 = pneg %p418
      %p556 = scmp.lt.s32.totalorder %s28, 1
      %s557 = scalar_select %p556, %s28, 1
      %s558 = smul.addr %s557, 8
      %s559 = scalar_lea.vmem %s17, %s558
      %p560 = scmp.lt.s32.totalorder %s28, 1
      %s561 = scalar_select %p560, %s28, 1
      %s562 = smul.addr %s561, 8
      %s563 = scalar_lea.vmem %s0, %s562
      %p564 = scmp.lt.s32.totalorder %s28, 1
      %s565 = scalar_select %p564, %s28, 1
      %s566 = smul.addr %s565, 8
      %s567 = scalar_lea.vmem %s1, %s566
      %p568 = scmp.lt.s32.totalorder %s28, 1
      %s569 = scalar_select %p568, %s28, 1
      %s570 = scalar_lea.vmem %s2, %s569
      %p571 = scmp.lt.s32.totalorder %s28, 1
      %s572 = scalar_select %p571, %s28, 1
      %s573 = smul.addr %s572, 8
      %s574 = scalar_lea.vmem %s17, %s573
      %v575 = vld [vmem:[%s563] sm:$0xff]
      %v576 = vld [vmem:[%s567] sm:$0xff]
      %v577 = vld [vmem:[%s9] sm:$0x1]
      %v578 = vld [vmem:[%s10] sm:$0x1]
      %v579 = vld [vmem:[%s3] sm:$0xff]
      %v580 = vld [vmem:[%s3 + $0x8] sm:$0xff]
      %v581 = vld [vmem:[%s3 + $0x10] sm:$0xff]
      %v582 = vld [vmem:[%s3 + $0x18] sm:$0xff]
      %v583 = vld [vmem:[%s4] sm:$0x1]
      %v585 = vlaneseq
      %v586 = vshrl.u32 %v585, 7
      %v587 = vsub.s32 0, %v586
      %v588 = vrot.slane %v583, %v587
      %vm590 = vcmask 261120
      %v592 = vsel %vm590, %v575, 0
      %594 = vmatprep.subr.mxu0 0.0
      %595 = vmatpush1.msra.mxu0 0.0
      %596 = vmatprep.subr.mxu0 0.0
      %597 = vmatpush1.msra.mxu0 0.0
      %598 = vmatprep.subr.mxu0 0.0
      %599 = vmatpush1.msra.mxu0 0.0
      %600 = vmatprep.subr.mxu0 0.0
      %601 = vmatpush1.msra.mxu0 0.0
      %602 = vmatprep.subr.mxu0 0.0
      %603 = vmatpush1.msra.mxu0 0.0
      %604 = vmatprep.subr.mxu0 0.0
      %605 = vmatpush1.msra.mxu0 0.0
      %606 = vmatprep.subr.mxu0 0.0
      %607 = vmatpush1.msra.mxu0 0.0
      %608 = vmatprep.subr.mxu0 0.0
      %609 = vmatpush1.msra.mxu0 0.0
      %610 = vmatprep.subr.mxu0 0.0
      %611 = vmatpush1.msra.mxu0 0.0
      %612 = vmatprep.subr.mxu0 0.0
      %613 = vmatpush1.msra.mxu0 0.0
      %614 = vmatprep.subr.mxu0 0.0
      %615 = vmatpush1.msra.mxu0 0.0
      %616 = vmatprep.subr.mxu0 0.0
      %617 = vmatpush1.msra.mxu0 0.0
      %618 = vmatprep.subr.mxu0 0.0
      %619 = vmatpush1.msra.mxu0 %v582
      %620 = vmatprep.subr.mxu0 0.0
      %621 = vmatpush1.msra.mxu0 %v581
      %622 = vmatprep.subr.mxu0 0.0
      %623 = vmatpush1.msra.mxu0 %v580
      %624 = vmatprep.subr.mxu0 0.0
      %625 = vmatpush1.msra.mxu0 %v579
      %626 = vmatprep.subr.mxu0 0.0
      %627 = vmatpush2.msra.mxu0 0.0
      %628 = vmatprep.subr.mxu0 0.0
      %629 = vmatpush2.msra.mxu0 0.0
      %630 = vmatprep.subr.mxu0 0.0
      %631 = vmatpush2.msra.mxu0 0.0
      %632 = vmatprep.subr.mxu0 0.0
      %633 = vmatpush2.msra.mxu0 0.0
      %634 = vmatprep.subr.mxu0 0.0
      %635 = vmatpush2.msra.mxu0 0.0
      %636 = vmatprep.subr.mxu0 0.0
      %637 = vmatpush2.msra.mxu0 0.0
      %638 = vmatprep.subr.mxu0 0.0
      %639 = vmatpush2.msra.mxu0 0.0
      %640 = vmatprep.subr.mxu0 0.0
      %641 = vmatpush2.msra.mxu0 0.0
      %642 = vmatprep.subr.mxu0 0.0
      %643 = vmatpush2.msra.mxu0 0.0
      %644 = vmatprep.subr.mxu0 0.0
      %645 = vmatpush2.msra.mxu0 0.0
      %646 = vmatprep.subr.mxu0 0.0
      %647 = vmatpush2.msra.mxu0 0.0
      %648 = vmatprep.subr.mxu0 0.0
      %649 = vmatpush2.msra.mxu0 0.0
      %650 = vmatprep.subr.mxu0 0.0
      %651 = vmatpush2.msra.mxu0 0.0
      %652 = vmatprep.subr.mxu0 0.0
      %653 = vmatpush2.msra.mxu0 0.0
      %654 = vmatprep.subr.mxu0 0.0
      %655 = vmatpush2.msra.mxu0 0.0
      %656 = vmatprep.subr.mxu0 0.0
      %657 = vmatpush2.msra.mxu0 0.0
      %658 = vmatprep.mubr.f32.mxu0 0.0
      %659 = vmatmul.mubr.f32.gmra.mxu0 %v592
      %v660 = vpop.f32.mrf.mxu0
      %v661 = vadd.f32 %v588, %v660
      %v662 = vpop.f32.mrf.mxu0
      %663 = vdwg.mxu0
      %v664 = vld [vmem:[%s5] sm:$0xff]
      %v665 = vld [vmem:[%s5 + $0x8] sm:$0xff]
      %v666 = vld [vmem:[%s5 + $0x10] sm:$0xff]
      %v667 = vld [vmem:[%s5 + $0x18] sm:$0xff]
      %v668 = vld [vmem:[%s6] sm:$0x1]
      %v670 = vlaneseq
      %v671 = vshrl.u32 %v670, 7
      %v672 = vsub.s32 0, %v671
      %v673 = vrot.slane %v668, %v672
      %v676 = vsel %vm590, %v576, 0
      %678 = vmatprep.subr.mxu0 0.0
      %679 = vmatpush1.msra.mxu0 0.0
      %680 = vmatprep.subr.mxu0 0.0
      %681 = vmatpush1.msra.mxu0 0.0
      %682 = vmatprep.subr.mxu0 0.0
      %683 = vmatpush1.msra.mxu0 0.0
      %684 = vmatprep.subr.mxu0 0.0
      %685 = vmatpush1.msra.mxu0 0.0
      %686 = vmatprep.subr.mxu0 0.0
      %687 = vmatpush1.msra.mxu0 0.0
      %688 = vmatprep.subr.mxu0 0.0
      %689 = vmatpush1.msra.mxu0 0.0
      %690 = vmatprep.subr.mxu0 0.0
      %691 = vmatpush1.msra.mxu0 0.0
      %692 = vmatprep.subr.mxu0 0.0
      %693 = vmatpush1.msra.mxu0 0.0
      %694 = vmatprep.subr.mxu0 0.0
      %695 = vmatpush1.msra.mxu0 0.0
      %696 = vmatprep.subr.mxu0 0.0
      %697 = vmatpush1.msra.mxu0 0.0
      %698 = vmatprep.subr.mxu0 0.0
      %699 = vmatpush1.msra.mxu0 0.0
      %700 = vmatprep.subr.mxu0 0.0
      %701 = vmatpush1.msra.mxu0 0.0
      %702 = vmatprep.subr.mxu0 0.0
      %703 = vmatpush1.msra.mxu0 %v667
      %704 = vmatprep.subr.mxu0 0.0
      %705 = vmatpush1.msra.mxu0 %v666
      %706 = vmatprep.subr.mxu0 0.0
      %707 = vmatpush1.msra.mxu0 %v665
      %708 = vmatprep.subr.mxu0 0.0
      %709 = vmatpush1.msra.mxu0 %v664
      %710 = vmatprep.subr.mxu0 0.0
      %711 = vmatpush2.msra.mxu0 0.0
      %712 = vmatprep.subr.mxu0 0.0
      %713 = vmatpush2.msra.mxu0 0.0
      %714 = vmatprep.subr.mxu0 0.0
      %715 = vmatpush2.msra.mxu0 0.0
      %716 = vmatprep.subr.mxu0 0.0
      %717 = vmatpush2.msra.mxu0 0.0
      %718 = vmatprep.subr.mxu0 0.0
      %719 = vmatpush2.msra.mxu0 0.0
      %720 = vmatprep.subr.mxu0 0.0
      %721 = vmatpush2.msra.mxu0 0.0
      %722 = vmatprep.subr.mxu0 0.0
      %723 = vmatpush2.msra.mxu0 0.0
      %724 = vmatprep.subr.mxu0 0.0
      %725 = vmatpush2.msra.mxu0 0.0
      %726 = vmatprep.subr.mxu0 0.0
      %727 = vmatpush2.msra.mxu0 0.0
      %728 = vmatprep.subr.mxu0 0.0
      %729 = vmatpush2.msra.mxu0 0.0
      %730 = vmatprep.subr.mxu0 0.0
      %731 = vmatpush2.msra.mxu0 0.0
      %732 = vmatprep.subr.mxu0 0.0
      %733 = vmatpush2.msra.mxu0 0.0
      %734 = vmatprep.subr.mxu0 0.0
      %735 = vmatpush2.msra.mxu0 0.0
      %736 = vmatprep.subr.mxu0 0.0
      %737 = vmatpush2.msra.mxu0 0.0
      %738 = vmatprep.subr.mxu0 0.0
      %739 = vmatpush2.msra.mxu0 0.0
      %740 = vmatprep.subr.mxu0 0.0
      %741 = vmatpush2.msra.mxu0 0.0
      %742 = vmatprep.mubr.f32.mxu0 0.0
      %743 = vmatmul.mubr.f32.gmra.mxu0 %v676
      %v744 = vpop.f32.mrf.mxu0
      %v745 = vadd.f32 %v673, %v744
      %v746 = vpop.f32.mrf.mxu0
      %747 = vdwg.mxu0
      %v748 = vld [vmem:[%s570] sm:$0x1]
      %v750 = vlaneseq
      %v751 = vshrl.u32 %v750, 7
      %v752 = vsub.s32 0, %v751
      %v753 = vrot.slane %v748, %v752
      %vm755 = vcmask 64512
      %v757 = vsel %vm755, %v661, 0
      %v760 = vsel %vm755, %v745, 0
      %762 = vmatprep.subr.mxu0 0.0
      %763 = vmatpush1.xpose.msra.mxu0 0.0
      %764 = vmatprep.subr.mxu0 0.0
      %765 = vmatpush1.xpose.msra.mxu0 0.0
      %766 = vmatprep.subr.mxu0 0.0
      %767 = vmatpush1.xpose.msra.mxu0 0.0
      %768 = vmatprep.subr.mxu0 0.0
      %769 = vmatpush1.xpose.msra.mxu0 0.0
      %770 = vmatprep.subr.mxu0 0.0
      %771 = vmatpush1.xpose.msra.mxu0 0.0
      %772 = vmatprep.subr.mxu0 0.0
      %773 = vmatpush1.xpose.msra.mxu0 0.0
      %774 = vmatprep.subr.mxu0 0.0
      %775 = vmatpush1.xpose.msra.mxu0 0.0
      %776 = vmatprep.subr.mxu0 0.0
      %777 = vmatpush1.xpose.msra.mxu0 0.0
      %778 = vmatprep.subr.mxu0 0.0
      %779 = vmatpush1.xpose.msra.mxu0 0.0
      %780 = vmatprep.subr.mxu0 0.0
      %781 = vmatpush1.xpose.msra.mxu0 0.0
      %782 = vmatprep.subr.mxu0 0.0
      %783 = vmatpush1.xpose.msra.mxu0 0.0
      %784 = vmatprep.subr.mxu0 0.0
      %785 = vmatpush1.xpose.msra.mxu0 0.0
      %786 = vmatprep.subr.mxu0 0.0
      %787 = vmatpush1.xpose.msra.mxu0 0.0
      %788 = vmatprep.subr.mxu0 0.0
      %789 = vmatpush1.xpose.msra.mxu0 0.0
      %790 = vmatprep.subr.mxu0 0.0
      %791 = vmatpush1.xpose.msra.mxu0 0.0
      %792 = vmatprep.subr.mxu0 0.0
      %793 = vmatpush1.xpose.msra.mxu0 %v760
      %794 = vmatprep.subr.mxu0 0.0
      %795 = vmatpush2.xpose.msra.mxu0 0.0
      %796 = vmatprep.subr.mxu0 0.0
      %797 = vmatpush2.xpose.msra.mxu0 0.0
      %798 = vmatprep.subr.mxu0 0.0
      %799 = vmatpush2.xpose.msra.mxu0 0.0
      %800 = vmatprep.subr.mxu0 0.0
      %801 = vmatpush2.xpose.msra.mxu0 0.0
      %802 = vmatprep.subr.mxu0 0.0
      %803 = vmatpush2.xpose.msra.mxu0 0.0
      %804 = vmatprep.subr.mxu0 0.0
      %805 = vmatpush2.xpose.msra.mxu0 0.0
      %806 = vmatprep.subr.mxu0 0.0
      %807 = vmatpush2.xpose.msra.mxu0 0.0
      %808 = vmatprep.subr.mxu0 0.0
      %809 = vmatpush2.xpose.msra.mxu0 0.0
      %810 = vmatprep.subr.mxu0 0.0
      %811 = vmatpush2.xpose.msra.mxu0 0.0
      %812 = vmatprep.subr.mxu0 0.0
      %813 = vmatpush2.xpose.msra.mxu0 0.0
      %814 = vmatprep.subr.mxu0 0.0
      %815 = vmatpush2.xpose.msra.mxu0 0.0
      %816 = vmatprep.subr.mxu0 0.0
      %817 = vmatpush2.xpose.msra.mxu0 0.0
      %818 = vmatprep.subr.mxu0 0.0
      %819 = vmatpush2.xpose.msra.mxu0 0.0
      %820 = vmatprep.subr.mxu0 0.0
      %821 = vmatpush2.xpose.msra.mxu0 0.0
      %822 = vmatprep.subr.mxu0 0.0
      %823 = vmatpush2.xpose.msra.mxu0 0.0
      %824 = vmatprep.subr.mxu0 0.0
      %825 = vmatpush2.xpose.msra.mxu0 0.0
      %826 = vmatprep.mubr.f32.mxu0 0.0
      %827 = vmatmul.mubr.f32.gmra.mxu0 %v757
      %v828 = vpop.f32.mrf.mxu0
      %v829 = vadd.f32 %v753, %v828
      %v830 = vpop.f32.mrf.mxu0
      %831 = vdwg.mxu0
      %v832 = vsel %vm755, %v829, -inf
      %833 = vmax.xlane.f32.xlu0 %v832
      %v834 = vpop.xlane.xlu0 %833
      %v835 = vsub.f32 %v829, %v834
      %v836 = vmul.f32 %v835, 1.442695
      %v837 = vpow.pop %v836
      %v838 = vsel %vm755, %v837, 0.0
      %839 = vadd.xlane.f32.xlu0 %v838
      %v840 = vpop.xlane.xlu0 %839
      %v841 = vrcp.pop %v840
      %v842 = vmul.f32 %v837, %v841
      %843 = vrot.lane.b32.xlu0 %v745, 96
      %v844 = vpop.permute.xlu0 %843
      %v847 = vsel %vm755, %v842, 0
      %849 = vmatprep.subr.mxu0 0.0
      %850 = vmatpush1.msra.mxu0 0.0
      %851 = vmatprep.subr.mxu0 0.0
      %852 = vmatpush1.msra.mxu0 0.0
      %853 = vmatprep.subr.mxu0 0.0
      %854 = vmatpush1.msra.mxu0 0.0
      %855 = vmatprep.subr.mxu0 0.0
      %856 = vmatpush1.msra.mxu0 0.0
      %857 = vmatprep.subr.mxu0 0.0
      %858 = vmatpush1.msra.mxu0 0.0
      %859 = vmatprep.subr.mxu0 0.0
      %860 = vmatpush1.msra.mxu0 0.0
      %861 = vmatprep.subr.mxu0 0.0
      %862 = vmatpush1.msra.mxu0 0.0
      %863 = vmatprep.subr.mxu0 0.0
      %864 = vmatpush1.msra.mxu0 0.0
      %865 = vmatprep.subr.mxu0 0.0
      %866 = vmatpush1.msra.mxu0 0.0
      %867 = vmatprep.subr.mxu0 0.0
      %868 = vmatpush1.msra.mxu0 0.0
      %869 = vmatprep.subr.mxu0 0.0
      %870 = vmatpush1.msra.mxu0 0.0
      %871 = vmatprep.subr.mxu0 0.0
      %872 = vmatpush1.msra.mxu0 0.0
      %873 = vmatprep.subr.mxu0 0.0
      %874 = vmatpush1.msra.mxu0 0.0
      %875 = vmatprep.subr.mxu0 0.0
      %876 = vmatpush1.msra.mxu0 0.0
      %877 = vmatprep.subr.mxu0 0.0
      %878 = vmatpush1.msra.mxu0 0.0
      %879 = vmatprep.subr.mxu0 0.0
      %880 = vmatpush1.msra.mxu0 %v844
      %881 = vmatprep.subr.mxu0 0.0
      %882 = vmatpush2.msra.mxu0 0.0
      %883 = vmatprep.subr.mxu0 0.0
      %884 = vmatpush2.msra.mxu0 0.0
      %885 = vmatprep.subr.mxu0 0.0
      %886 = vmatpush2.msra.mxu0 0.0
      %887 = vmatprep.subr.mxu0 0.0
      %888 = vmatpush2.msra.mxu0 0.0
      %889 = vmatprep.subr.mxu0 0.0
      %890 = vmatpush2.msra.mxu0 0.0
      %891 = vmatprep.subr.mxu0 0.0
      %892 = vmatpush2.msra.mxu0 0.0
      %893 = vmatprep.subr.mxu0 0.0
      %894 = vmatpush2.msra.mxu0 0.0
      %895 = vmatprep.subr.mxu0 0.0
      %896 = vmatpush2.msra.mxu0 0.0
      %897 = vmatprep.subr.mxu0 0.0
      %898 = vmatpush2.msra.mxu0 0.0
      %899 = vmatprep.subr.mxu0 0.0
      %900 = vmatpush2.msra.mxu0 0.0
      %901 = vmatprep.subr.mxu0 0.0
      %902 = vmatpush2.msra.mxu0 0.0
      %903 = vmatprep.subr.mxu0 0.0
      %904 = vmatpush2.msra.mxu0 0.0
      %905 = vmatprep.subr.mxu0 0.0
      %906 = vmatpush2.msra.mxu0 0.0
      %907 = vmatprep.subr.mxu0 0.0
      %908 = vmatpush2.msra.mxu0 0.0
      %909 = vmatprep.subr.mxu0 0.0
      %910 = vmatpush2.msra.mxu0 0.0
      %911 = vmatprep.subr.mxu0 0.0
      %912 = vmatpush2.msra.mxu0 0.0
      %913 = vmatprep.mubr.f32.mxu0 0.0
      %914 = vmatmul.mubr.f32.gmra.mxu0 %v847
      %v915 = vpop.f32.mrf.mxu0
      %v916 = vadd.f32 0.0, %v915
      %v917 = vpop.f32.mrf.mxu0
      %918 = vdwg.mxu0
      %919 = vrot.lane.b32.xlu0 %v661, 120
      %v920 = vpop.permute.xlu0 %919
      %921 = vrot.lane.b32.xlu0 %v745, 120
      %v922 = vpop.permute.xlu0 %921
      %v923 = vsel %vm755, %v920, 0
      %v925 = vsel %vm755, %v922, 0
      %927 = vmatprep.subr.mxu0 0.0
      %928 = vmatpush1.xpose.msra.mxu0 0.0
      %929 = vmatprep.subr.mxu0 0.0
      %930 = vmatpush1.xpose.msra.mxu0 0.0
      %931 = vmatprep.subr.mxu0 0.0
      %932 = vmatpush1.xpose.msra.mxu0 0.0
      %933 = vmatprep.subr.mxu0 0.0
      %934 = vmatpush1.xpose.msra.mxu0 0.0
      %935 = vmatprep.subr.mxu0 0.0
      %936 = vmatpush1.xpose.msra.mxu0 0.0
      %937 = vmatprep.subr.mxu0 0.0
      %938 = vmatpush1.xpose.msra.mxu0 0.0
      %939 = vmatprep.subr.mxu0 0.0
      %940 = vmatpush1.xpose.msra.mxu0 0.0
      %941 = vmatprep.subr.mxu0 0.0
      %942 = vmatpush1.xpose.msra.mxu0 0.0
      %943 = vmatprep.subr.mxu0 0.0
      %944 = vmatpush1.xpose.msra.mxu0 0.0
      %945 = vmatprep.subr.mxu0 0.0
      %946 = vmatpush1.xpose.msra.mxu0 0.0
      %947 = vmatprep.subr.mxu0 0.0
      %948 = vmatpush1.xpose.msra.mxu0 0.0
      %949 = vmatprep.subr.mxu0 0.0
      %950 = vmatpush1.xpose.msra.mxu0 0.0
      %951 = vmatprep.subr.mxu0 0.0
      %952 = vmatpush1.xpose.msra.mxu0 0.0
      %953 = vmatprep.subr.mxu0 0.0
      %954 = vmatpush1.xpose.msra.mxu0 0.0
      %955 = vmatprep.subr.mxu0 0.0
      %956 = vmatpush1.xpose.msra.mxu0 0.0
      %957 = vmatprep.subr.mxu0 0.0
      %958 = vmatpush1.xpose.msra.mxu0 %v925
      %959 = vmatprep.subr.mxu0 0.0
      %960 = vmatpush2.xpose.msra.mxu0 0.0
      %961 = vmatprep.subr.mxu0 0.0
      %962 = vmatpush2.xpose.msra.mxu0 0.0
      %963 = vmatprep.subr.mxu0 0.0
      %964 = vmatpush2.xpose.msra.mxu0 0.0
      %965 = vmatprep.subr.mxu0 0.0
      %966 = vmatpush2.xpose.msra.mxu0 0.0
      %967 = vmatprep.subr.mxu0 0.0
      %968 = vmatpush2.xpose.msra.mxu0 0.0
      %969 = vmatprep.subr.mxu0 0.0
      %970 = vmatpush2.xpose.msra.mxu0 0.0
      %971 = vmatprep.subr.mxu0 0.0
      %972 = vmatpush2.xpose.msra.mxu0 0.0
      %973 = vmatprep.subr.mxu0 0.0
      %974 = vmatpush2.xpose.msra.mxu0 0.0
      %975 = vmatprep.subr.mxu0 0.0
      %976 = vmatpush2.xpose.msra.mxu0 0.0
      %977 = vmatprep.subr.mxu0 0.0
      %978 = vmatpush2.xpose.msra.mxu0 0.0
      %979 = vmatprep.subr.mxu0 0.0
      %980 = vmatpush2.xpose.msra.mxu0 0.0
      %981 = vmatprep.subr.mxu0 0.0
      %982 = vmatpush2.xpose.msra.mxu0 0.0
      %983 = vmatprep.subr.mxu0 0.0
      %984 = vmatpush2.xpose.msra.mxu0 0.0
      %985 = vmatprep.subr.mxu0 0.0
      %986 = vmatpush2.xpose.msra.mxu0 0.0
      %987 = vmatprep.subr.mxu0 0.0
      %988 = vmatpush2.xpose.msra.mxu0 0.0
      %989 = vmatprep.subr.mxu0 0.0
      %990 = vmatpush2.xpose.msra.mxu0 0.0
      %991 = vmatprep.mubr.f32.mxu0 0.0
      %992 = vmatmul.mubr.f32.gmra.mxu0 %v923
      %v993 = vpop.f32.mrf.mxu0
      %v994 = vadd.f32 %v753, %v993
      %v995 = vpop.f32.mrf.mxu0
      %996 = vdwg.mxu0
      %v997 = vsel %vm755, %v994, -inf
      %998 = vmax.xlane.f32.xlu0 %v997
      %v999 = vpop.xlane.xlu0 %998
      %v1000 = vsub.f32 %v994, %v999
      %v1001 = vmul.f32 %v1000, 1.442695
      %v1002 = vpow.pop %v1001
      %v1003 = vsel %vm755, %v1002, 0.0
      %1004 = vadd.xlane.f32.xlu0 %v1003
      %v1005 = vpop.xlane.xlu0 %1004
      %v1006 = vrcp.pop %v1005
      %v1007 = vmul.f32 %v1002, %v1006
      %1008 = vrot.lane.b32.xlu0 %v745, 88
      %v1009 = vpop.permute.xlu0 %1008
      %v1012 = vsel %vm755, %v1007, 0
      %1014 = vmatprep.subr.mxu0 0.0
      %1015 = vmatpush1.msra.mxu0 0.0
      %1016 = vmatprep.subr.mxu0 0.0
      %1017 = vmatpush1.msra.mxu0 0.0
      %1018 = vmatprep.subr.mxu0 0.0
      %1019 = vmatpush1.msra.mxu0 0.0
      %1020 = vmatprep.subr.mxu0 0.0
      %1021 = vmatpush1.msra.mxu0 0.0
      %1022 = vmatprep.subr.mxu0 0.0
      %1023 = vmatpush1.msra.mxu0 0.0
      %1024 = vmatprep.subr.mxu0 0.0
      %1025 = vmatpush1.msra.mxu0 0.0
      %1026 = vmatprep.subr.mxu0 0.0
      %1027 = vmatpush1.msra.mxu0 0.0
      %1028 = vmatprep.subr.mxu0 0.0
      %1029 = vmatpush1.msra.mxu0 0.0
      %1030 = vmatprep.subr.mxu0 0.0
      %1031 = vmatpush1.msra.mxu0 0.0
      %1032 = vmatprep.subr.mxu0 0.0
      %1033 = vmatpush1.msra.mxu0 0.0
      %1034 = vmatprep.subr.mxu0 0.0
      %1035 = vmatpush1.msra.mxu0 0.0
      %1036 = vmatprep.subr.mxu0 0.0
      %1037 = vmatpush1.msra.mxu0 0.0
      %1038 = vmatprep.subr.mxu0 0.0
      %1039 = vmatpush1.msra.mxu0 0.0
      %1040 = vmatprep.subr.mxu0 0.0
      %1041 = vmatpush1.msra.mxu0 0.0
      %1042 = vmatprep.subr.mxu0 0.0
      %1043 = vmatpush1.msra.mxu0 0.0
      %1044 = vmatprep.subr.mxu0 0.0
      %1045 = vmatpush1.msra.mxu0 %v1009
      %1046 = vmatprep.subr.mxu0 0.0
      %1047 = vmatpush2.msra.mxu0 0.0
      %1048 = vmatprep.subr.mxu0 0.0
      %1049 = vmatpush2.msra.mxu0 0.0
      %1050 = vmatprep.subr.mxu0 0.0
      %1051 = vmatpush2.msra.mxu0 0.0
      %1052 = vmatprep.subr.mxu0 0.0
      %1053 = vmatpush2.msra.mxu0 0.0
      %1054 = vmatprep.subr.mxu0 0.0
      %1055 = vmatpush2.msra.mxu0 0.0
      %1056 = vmatprep.subr.mxu0 0.0
      %1057 = vmatpush2.msra.mxu0 0.0
      %1058 = vmatprep.subr.mxu0 0.0
      %1059 = vmatpush2.msra.mxu0 0.0
      %1060 = vmatprep.subr.mxu0 0.0
      %1061 = vmatpush2.msra.mxu0 0.0
      %1062 = vmatprep.subr.mxu0 0.0
      %1063 = vmatpush2.msra.mxu0 0.0
      %1064 = vmatprep.subr.mxu0 0.0
      %1065 = vmatpush2.msra.mxu0 0.0
      %1066 = vmatprep.subr.mxu0 0.0
      %1067 = vmatpush2.msra.mxu0 0.0
      %1068 = vmatprep.subr.mxu0 0.0
      %1069 = vmatpush2.msra.mxu0 0.0
      %1070 = vmatprep.subr.mxu0 0.0
      %1071 = vmatpush2.msra.mxu0 0.0
      %1072 = vmatprep.subr.mxu0 0.0
      %1073 = vmatpush2.msra.mxu0 0.0
      %1074 = vmatprep.subr.mxu0 0.0
      %1075 = vmatpush2.msra.mxu0 0.0
      %1076 = vmatprep.subr.mxu0 0.0
      %1077 = vmatpush2.msra.mxu0 0.0
      %1078 = vmatprep.mubr.f32.mxu0 0.0
      %1079 = vmatmul.mubr.f32.gmra.mxu0 %v1012
      %v1080 = vpop.f32.mrf.mxu0
      %v1081 = vadd.f32 0.0, %v1080
      %v1082 = vpop.f32.mrf.mxu0
      %1083 = vdwg.mxu0
      %1084 = vrot.lane.b32.xlu0 %v661, 112
      %v1085 = vpop.permute.xlu0 %1084
      %1086 = vrot.lane.b32.xlu0 %v745, 112
      %v1087 = vpop.permute.xlu0 %1086
      %v1088 = vsel %vm755, %v1085, 0
      %v1090 = vsel %vm755, %v1087, 0
      %1092 = vmatprep.subr.mxu0 0.0
      %1093 = vmatpush1.xpose.msra.mxu0 0.0
      %1094 = vmatprep.subr.mxu0 0.0
      %1095 = vmatpush1.xpose.msra.mxu0 0.0
      %1096 = vmatprep.subr.mxu0 0.0
      %1097 = vmatpush1.xpose.msra.mxu0 0.0
      %1098 = vmatprep.subr.mxu0 0.0
      %1099 = vmatpush1.xpose.msra.mxu0 0.0
      %1100 = vmatprep.subr.mxu0 0.0
      %1101 = vmatpush1.xpose.msra.mxu0 0.0
      %1102 = vmatprep.subr.mxu0 0.0
      %1103 = vmatpush1.xpose.msra.mxu0 0.0
      %1104 = vmatprep.subr.mxu0 0.0
      %1105 = vmatpush1.xpose.msra.mxu0 0.0
      %1106 = vmatprep.subr.mxu0 0.0
      %1107 = vmatpush1.xpose.msra.mxu0 0.0
      %1108 = vmatprep.subr.mxu0 0.0
      %1109 = vmatpush1.xpose.msra.mxu0 0.0
      %1110 = vmatprep.subr.mxu0 0.0
      %1111 = vmatpush1.xpose.msra.mxu0 0.0
      %1112 = vmatprep.subr.mxu0 0.0
      %1113 = vmatpush1.xpose.msra.mxu0 0.0
      %1114 = vmatprep.subr.mxu0 0.0
      %1115 = vmatpush1.xpose.msra.mxu0 0.0
      %1116 = vmatprep.subr.mxu0 0.0
      %1117 = vmatpush1.xpose.msra.mxu0 0.0
      %1118 = vmatprep.subr.mxu0 0.0
      %1119 = vmatpush1.xpose.msra.mxu0 0.0
      %1120 = vmatprep.subr.mxu0 0.0
      %1121 = vmatpush1.xpose.msra.mxu0 0.0
      %1122 = vmatprep.subr.mxu0 0.0
      %1123 = vmatpush1.xpose.msra.mxu0 %v1090
      %1124 = vmatprep.subr.mxu0 0.0
      %1125 = vmatpush2.xpose.msra.mxu0 0.0
      %1126 = vmatprep.subr.mxu0 0.0
      %1127 = vmatpush2.xpose.msra.mxu0 0.0
      %1128 = vmatprep.subr.mxu0 0.0
      %1129 = vmatpush2.xpose.msra.mxu0 0.0
      %1130 = vmatprep.subr.mxu0 0.0
      %1131 = vmatpush2.xpose.msra.mxu0 0.0
      %1132 = vmatprep.subr.mxu0 0.0
      %1133 = vmatpush2.xpose.msra.mxu0 0.0
      %1134 = vmatprep.subr.mxu0 0.0
      %1135 = vmatpush2.xpose.msra.mxu0 0.0
      %1136 = vmatprep.subr.mxu0 0.0
      %1137 = vmatpush2.xpose.msra.mxu0 0.0
      %1138 = vmatprep.subr.mxu0 0.0
      %1139 = vmatpush2.xpose.msra.mxu0 0.0
      %1140 = vmatprep.subr.mxu0 0.0
      %1141 = vmatpush2.xpose.msra.mxu0 0.0
      %1142 = vmatprep.subr.mxu0 0.0
      %1143 = vmatpush2.xpose.msra.mxu0 0.0
      %1144 = vmatprep.subr.mxu0 0.0
      %1145 = vmatpush2.xpose.msra.mxu0 0.0
      %1146 = vmatprep.subr.mxu0 0.0
      %1147 = vmatpush2.xpose.msra.mxu0 0.0
      %1148 = vmatprep.subr.mxu0 0.0
      %1149 = vmatpush2.xpose.msra.mxu0 0.0
      %1150 = vmatprep.subr.mxu0 0.0
      %1151 = vmatpush2.xpose.msra.mxu0 0.0
      %1152 = vmatprep.subr.mxu0 0.0
      %1153 = vmatpush2.xpose.msra.mxu0 0.0
      %1154 = vmatprep.subr.mxu0 0.0
      %1155 = vmatpush2.xpose.msra.mxu0 0.0
      %1156 = vmatprep.mubr.f32.mxu0 0.0
      %1157 = vmatmul.mubr.f32.gmra.mxu0 %v1088
      %v1158 = vpop.f32.mrf.mxu0
      %v1159 = vadd.f32 %v753, %v1158
      %v1160 = vpop.f32.mrf.mxu0
      %1161 = vdwg.mxu0
      %v1162 = vsel %vm755, %v1159, -inf
      %1163 = vmax.xlane.f32.xlu0 %v1162
      %v1164 = vpop.xlane.xlu0 %1163
      %v1165 = vsub.f32 %v1159, %v1164
      %v1166 = vmul.f32 %v1165, 1.442695
      %v1167 = vpow.pop %v1166
      %v1168 = vsel %vm755, %v1167, 0.0
      %1169 = vadd.xlane.f32.xlu0 %v1168
      %v1170 = vpop.xlane.xlu0 %1169
      %v1171 = vrcp.pop %v1170
      %v1172 = vmul.f32 %v1167, %v1171
      %1173 = vrot.lane.b32.xlu0 %v745, 80
      %v1174 = vpop.permute.xlu0 %1173
      %v1177 = vsel %vm755, %v1172, 0
      %1179 = vmatprep.subr.mxu0 0.0
      %1180 = vmatpush1.msra.mxu0 0.0
      %1181 = vmatprep.subr.mxu0 0.0
      %1182 = vmatpush1.msra.mxu0 0.0
      %1183 = vmatprep.subr.mxu0 0.0
      %1184 = vmatpush1.msra.mxu0 0.0
      %1185 = vmatprep.subr.mxu0 0.0
      %1186 = vmatpush1.msra.mxu0 0.0
      %1187 = vmatprep.subr.mxu0 0.0
      %1188 = vmatpush1.msra.mxu0 0.0
      %1189 = vmatprep.subr.mxu0 0.0
      %1190 = vmatpush1.msra.mxu0 0.0
      %1191 = vmatprep.subr.mxu0 0.0
      %1192 = vmatpush1.msra.mxu0 0.0
      %1193 = vmatprep.subr.mxu0 0.0
      %1194 = vmatpush1.msra.mxu0 0.0
      %1195 = vmatprep.subr.mxu0 0.0
      %1196 = vmatpush1.msra.mxu0 0.0
      %1197 = vmatprep.subr.mxu0 0.0
      %1198 = vmatpush1.msra.mxu0 0.0
      %1199 = vmatprep.subr.mxu0 0.0
      %1200 = vmatpush1.msra.mxu0 0.0
      %1201 = vmatprep.subr.mxu0 0.0
      %1202 = vmatpush1.msra.mxu0 0.0
      %1203 = vmatprep.subr.mxu0 0.0
      %1204 = vmatpush1.msra.mxu0 0.0
      %1205 = vmatprep.subr.mxu0 0.0
      %1206 = vmatpush1.msra.mxu0 0.0
      %1207 = vmatprep.subr.mxu0 0.0
      %1208 = vmatpush1.msra.mxu0 0.0
      %1209 = vmatprep.subr.mxu0 0.0
      %1210 = vmatpush1.msra.mxu0 %v1174
      %1211 = vmatprep.subr.mxu0 0.0
      %1212 = vmatpush2.msra.mxu0 0.0
      %1213 = vmatprep.subr.mxu0 0.0
      %1214 = vmatpush2.msra.mxu0 0.0
      %1215 = vmatprep.subr.mxu0 0.0
      %1216 = vmatpush2.msra.mxu0 0.0
      %1217 = vmatprep.subr.mxu0 0.0
      %1218 = vmatpush2.msra.mxu0 0.0
      %1219 = vmatprep.subr.mxu0 0.0
      %1220 = vmatpush2.msra.mxu0 0.0
      %1221 = vmatprep.subr.mxu0 0.0
      %1222 = vmatpush2.msra.mxu0 0.0
      %1223 = vmatprep.subr.mxu0 0.0
      %1224 = vmatpush2.msra.mxu0 0.0
      %1225 = vmatprep.subr.mxu0 0.0
      %1226 = vmatpush2.msra.mxu0 0.0
      %1227 = vmatprep.subr.mxu0 0.0
      %1228 = vmatpush2.msra.mxu0 0.0
      %1229 = vmatprep.subr.mxu0 0.0
      %1230 = vmatpush2.msra.mxu0 0.0
      %1231 = vmatprep.subr.mxu0 0.0
      %1232 = vmatpush2.msra.mxu0 0.0
      %1233 = vmatprep.subr.mxu0 0.0
      %1234 = vmatpush2.msra.mxu0 0.0
      %1235 = vmatprep.subr.mxu0 0.0
      %1236 = vmatpush2.msra.mxu0 0.0
      %1237 = vmatprep.subr.mxu0 0.0
      %1238 = vmatpush2.msra.mxu0 0.0
      %1239 = vmatprep.subr.mxu0 0.0
      %1240 = vmatpush2.msra.mxu0 0.0
      %1241 = vmatprep.subr.mxu0 0.0
      %1242 = vmatpush2.msra.mxu0 0.0
      %1243 = vmatprep.mubr.f32.mxu0 0.0
      %1244 = vmatmul.mubr.f32.gmra.mxu0 %v1177
      %v1245 = vpop.f32.mrf.mxu0
      %v1246 = vadd.f32 0.0, %v1245
      %v1247 = vpop.f32.mrf.mxu0
      %1248 = vdwg.mxu0
      %1249 = vrot.lane.b32.xlu0 %v661, 104
      %v1250 = vpop.permute.xlu0 %1249
      %1251 = vrot.lane.b32.xlu0 %v745, 104
      %v1252 = vpop.permute.xlu0 %1251
      %v1253 = vsel %vm755, %v1250, 0
      %v1255 = vsel %vm755, %v1252, 0
      %1257 = vmatprep.subr.mxu0 0.0
      %1258 = vmatpush1.xpose.msra.mxu0 0.0
      %1259 = vmatprep.subr.mxu0 0.0
      %1260 = vmatpush1.xpose.msra.mxu0 0.0
      %1261 = vmatprep.subr.mxu0 0.0
      %1262 = vmatpush1.xpose.msra.mxu0 0.0
      %1263 = vmatprep.subr.mxu0 0.0
      %1264 = vmatpush1.xpose.msra.mxu0 0.0
      %1265 = vmatprep.subr.mxu0 0.0
      %1266 = vmatpush1.xpose.msra.mxu0 0.0
      %1267 = vmatprep.subr.mxu0 0.0
      %1268 = vmatpush1.xpose.msra.mxu0 0.0
      %1269 = vmatprep.subr.mxu0 0.0
      %1270 = vmatpush1.xpose.msra.mxu0 0.0
      %1271 = vmatprep.subr.mxu0 0.0
      %1272 = vmatpush1.xpose.msra.mxu0 0.0
      %1273 = vmatprep.subr.mxu0 0.0
      %1274 = vmatpush1.xpose.msra.mxu0 0.0
      %1275 = vmatprep.subr.mxu0 0.0
      %1276 = vmatpush1.xpose.msra.mxu0 0.0
      %1277 = vmatprep.subr.mxu0 0.0
      %1278 = vmatpush1.xpose.msra.mxu0 0.0
      %1279 = vmatprep.subr.mxu0 0.0
      %1280 = vmatpush1.xpose.msra.mxu0 0.0
      %1281 = vmatprep.subr.mxu0 0.0
      %1282 = vmatpush1.xpose.msra.mxu0 0.0
      %1283 = vmatprep.subr.mxu0 0.0
      %1284 = vmatpush1.xpose.msra.mxu0 0.0
      %1285 = vmatprep.subr.mxu0 0.0
      %1286 = vmatpush1.xpose.msra.mxu0 0.0
      %1287 = vmatprep.subr.mxu0 0.0
      %1288 = vmatpush1.xpose.msra.mxu0 %v1255
      %1289 = vmatprep.subr.mxu0 0.0
      %1290 = vmatpush2.xpose.msra.mxu0 0.0
      %1291 = vmatprep.subr.mxu0 0.0
      %1292 = vmatpush2.xpose.msra.mxu0 0.0
      %1293 = vmatprep.subr.mxu0 0.0
      %1294 = vmatpush2.xpose.msra.mxu0 0.0
      %1295 = vmatprep.subr.mxu0 0.0
      %1296 = vmatpush2.xpose.msra.mxu0 0.0
      %1297 = vmatprep.subr.mxu0 0.0
      %1298 = vmatpush2.xpose.msra.mxu0 0.0
      %1299 = vmatprep.subr.mxu0 0.0
      %1300 = vmatpush2.xpose.msra.mxu0 0.0
      %1301 = vmatprep.subr.mxu0 0.0
      %1302 = vmatpush2.xpose.msra.mxu0 0.0
      %1303 = vmatprep.subr.mxu0 0.0
      %1304 = vmatpush2.xpose.msra.mxu0 0.0
      %1305 = vmatprep.subr.mxu0 0.0
      %1306 = vmatpush2.xpose.msra.mxu0 0.0
      %1307 = vmatprep.subr.mxu0 0.0
      %1308 = vmatpush2.xpose.msra.mxu0 0.0
      %1309 = vmatprep.subr.mxu0 0.0
      %1310 = vmatpush2.xpose.msra.mxu0 0.0
      %1311 = vmatprep.subr.mxu0 0.0
      %1312 = vmatpush2.xpose.msra.mxu0 0.0
      %1313 = vmatprep.subr.mxu0 0.0
      %1314 = vmatpush2.xpose.msra.mxu0 0.0
      %1315 = vmatprep.subr.mxu0 0.0
      %1316 = vmatpush2.xpose.msra.mxu0 0.0
      %1317 = vmatprep.subr.mxu0 0.0
      %1318 = vmatpush2.xpose.msra.mxu0 0.0
      %1319 = vmatprep.subr.mxu0 0.0
      %1320 = vmatpush2.xpose.msra.mxu0 0.0
      %1321 = vmatprep.mubr.f32.mxu0 0.0
      %1322 = vmatmul.mubr.f32.gmra.mxu0 %v1253
      %v1323 = vpop.f32.mrf.mxu0
      %v1324 = vadd.f32 %v753, %v1323
      %v1325 = vpop.f32.mrf.mxu0
      %1326 = vdwg.mxu0
      %v1327 = vsel %vm755, %v1324, -inf
      %1328 = vmax.xlane.f32.xlu0 %v1327
      %v1329 = vpop.xlane.xlu0 %1328
      %v1330 = vsub.f32 %v1324, %v1329
      %v1331 = vmul.f32 %v1330, 1.442695
      %v1332 = vpow.pop %v1331
      %v1333 = vsel %vm755, %v1332, 0.0
      %1334 = vadd.xlane.f32.xlu0 %v1333
      %v1335 = vpop.xlane.xlu0 %1334
      %v1336 = vrcp.pop %v1335
      %v1337 = vmul.f32 %v1332, %v1336
      %1338 = vrot.lane.b32.xlu0 %v745, 72
      %v1339 = vpop.permute.xlu0 %1338
      %v1342 = vsel %vm755, %v1337, 0
      %1344 = vmatprep.subr.mxu0 0.0
      %1345 = vmatpush1.msra.mxu0 0.0
      %1346 = vmatprep.subr.mxu0 0.0
      %1347 = vmatpush1.msra.mxu0 0.0
      %1348 = vmatprep.subr.mxu0 0.0
      %1349 = vmatpush1.msra.mxu0 0.0
      %1350 = vmatprep.subr.mxu0 0.0
      %1351 = vmatpush1.msra.mxu0 0.0
      %1352 = vmatprep.subr.mxu0 0.0
      %1353 = vmatpush1.msra.mxu0 0.0
      %1354 = vmatprep.subr.mxu0 0.0
      %1355 = vmatpush1.msra.mxu0 0.0
      %1356 = vmatprep.subr.mxu0 0.0
      %1357 = vmatpush1.msra.mxu0 0.0
      %1358 = vmatprep.subr.mxu0 0.0
      %1359 = vmatpush1.msra.mxu0 0.0
      %1360 = vmatprep.subr.mxu0 0.0
      %1361 = vmatpush1.msra.mxu0 0.0
      %1362 = vmatprep.subr.mxu0 0.0
      %1363 = vmatpush1.msra.mxu0 0.0
      %1364 = vmatprep.subr.mxu0 0.0
      %1365 = vmatpush1.msra.mxu0 0.0
      %1366 = vmatprep.subr.mxu0 0.0
      %1367 = vmatpush1.msra.mxu0 0.0
      %1368 = vmatprep.subr.mxu0 0.0
      %1369 = vmatpush1.msra.mxu0 0.0
      %1370 = vmatprep.subr.mxu0 0.0
      %1371 = vmatpush1.msra.mxu0 0.0
      %1372 = vmatprep.subr.mxu0 0.0
      %1373 = vmatpush1.msra.mxu0 0.0
      %1374 = vmatprep.subr.mxu0 0.0
      %1375 = vmatpush1.msra.mxu0 %v1339
      %1376 = vmatprep.subr.mxu0 0.0
      %1377 = vmatpush2.msra.mxu0 0.0
      %1378 = vmatprep.subr.mxu0 0.0
      %1379 = vmatpush2.msra.mxu0 0.0
      %1380 = vmatprep.subr.mxu0 0.0
      %1381 = vmatpush2.msra.mxu0 0.0
      %1382 = vmatprep.subr.mxu0 0.0
      %1383 = vmatpush2.msra.mxu0 0.0
      %1384 = vmatprep.subr.mxu0 0.0
      %1385 = vmatpush2.msra.mxu0 0.0
      %1386 = vmatprep.subr.mxu0 0.0
      %1387 = vmatpush2.msra.mxu0 0.0
      %1388 = vmatprep.subr.mxu0 0.0
      %1389 = vmatpush2.msra.mxu0 0.0
      %1390 = vmatprep.subr.mxu0 0.0
      %1391 = vmatpush2.msra.mxu0 0.0
      %1392 = vmatprep.subr.mxu0 0.0
      %1393 = vmatpush2.msra.mxu0 0.0
      %1394 = vmatprep.subr.mxu0 0.0
      %1395 = vmatpush2.msra.mxu0 0.0
      %1396 = vmatprep.subr.mxu0 0.0
      %1397 = vmatpush2.msra.mxu0 0.0
      %1398 = vmatprep.subr.mxu0 0.0
      %1399 = vmatpush2.msra.mxu0 0.0
      %1400 = vmatprep.subr.mxu0 0.0
      %1401 = vmatpush2.msra.mxu0 0.0
      %1402 = vmatprep.subr.mxu0 0.0
      %1403 = vmatpush2.msra.mxu0 0.0
      %1404 = vmatprep.subr.mxu0 0.0
      %1405 = vmatpush2.msra.mxu0 0.0
      %1406 = vmatprep.subr.mxu0 0.0
      %1407 = vmatpush2.msra.mxu0 0.0
      %1408 = vmatprep.mubr.f32.mxu0 0.0
      %1409 = vmatmul.mubr.f32.gmra.mxu0 %v1342
      %v1410 = vpop.f32.mrf.mxu0
      %v1411 = vadd.f32 0.0, %v1410
      %v1412 = vpop.f32.mrf.mxu0
      %1413 = vdwg.mxu0
      %1415 = vrot.lane.b32.xlu0 %v1081, 8
      %v1416 = vpop.permute.xlu0 %1415
      %1419 = vrot.lane.b32.xlu0 %v1246, 16
      %v1420 = vpop.permute.xlu0 %1419
      %1423 = vrot.lane.b32.xlu0 %v1411, 24
      %v1424 = vpop.permute.xlu0 %1423
      %v1426 = vsel %vm755, %v916, %v1416
      %vm1427 = vcmask 130048
      %v1428 = vsel %vm1427, %v1426, %v1420
      %vm1429 = vcmask 195584
      %v1430 = vsel %vm1429, %v1428, %v1424
      %v1431 = vld [vmem:[%s7] sm:$0xff]
      %v1432 = vld [vmem:[%s7 + $0x8] sm:$0xff]
      %v1433 = vld [vmem:[%s7 + $0x10] sm:$0xff]
      %v1434 = vld [vmem:[%s7 + $0x18] sm:$0xff]
      %v1435 = vld [vmem:[%s8] sm:$0x1]
      %v1437 = vlaneseq
      %v1438 = vshrl.u32 %v1437, 7
      %v1439 = vsub.s32 0, %v1438
      %v1440 = vrot.slane %v1435, %v1439
      %v1443 = vsel %vm590, %v1430, 0
      %1445 = vmatprep.subr.mxu0 0.0
      %1446 = vmatpush1.msra.mxu0 0.0
      %1447 = vmatprep.subr.mxu0 0.0
      %1448 = vmatpush1.msra.mxu0 0.0
      %1449 = vmatprep.subr.mxu0 0.0
      %1450 = vmatpush1.msra.mxu0 0.0
      %1451 = vmatprep.subr.mxu0 0.0
      %1452 = vmatpush1.msra.mxu0 0.0
      %1453 = vmatprep.subr.mxu0 0.0
      %1454 = vmatpush1.msra.mxu0 0.0
      %1455 = vmatprep.subr.mxu0 0.0
      %1456 = vmatpush1.msra.mxu0 0.0
      %1457 = vmatprep.subr.mxu0 0.0
      %1458 = vmatpush1.msra.mxu0 0.0
      %1459 = vmatprep.subr.mxu0 0.0
      %1460 = vmatpush1.msra.mxu0 0.0
      %1461 = vmatprep.subr.mxu0 0.0
      %1462 = vmatpush1.msra.mxu0 0.0
      %1463 = vmatprep.subr.mxu0 0.0
      %1464 = vmatpush1.msra.mxu0 0.0
      %1465 = vmatprep.subr.mxu0 0.0
      %1466 = vmatpush1.msra.mxu0 0.0
      %1467 = vmatprep.subr.mxu0 0.0
      %1468 = vmatpush1.msra.mxu0 0.0
      %1469 = vmatprep.subr.mxu0 0.0
      %1470 = vmatpush1.msra.mxu0 %v1434
      %1471 = vmatprep.subr.mxu0 0.0
      %1472 = vmatpush1.msra.mxu0 %v1433
      %1473 = vmatprep.subr.mxu0 0.0
      %1474 = vmatpush1.msra.mxu0 %v1432
      %1475 = vmatprep.subr.mxu0 0.0
      %1476 = vmatpush1.msra.mxu0 %v1431
      %1477 = vmatprep.subr.mxu0 0.0
      %1478 = vmatpush2.msra.mxu0 0.0
      %1479 = vmatprep.subr.mxu0 0.0
      %1480 = vmatpush2.msra.mxu0 0.0
      %1481 = vmatprep.subr.mxu0 0.0
      %1482 = vmatpush2.msra.mxu0 0.0
      %1483 = vmatprep.subr.mxu0 0.0
      %1484 = vmatpush2.msra.mxu0 0.0
      %1485 = vmatprep.subr.mxu0 0.0
      %1486 = vmatpush2.msra.mxu0 0.0
      %1487 = vmatprep.subr.mxu0 0.0
      %1488 = vmatpush2.msra.mxu0 0.0
      %1489 = vmatprep.subr.mxu0 0.0
      %1490 = vmatpush2.msra.mxu0 0.0
      %1491 = vmatprep.subr.mxu0 0.0
      %1492 = vmatpush2.msra.mxu0 0.0
      %1493 = vmatprep.subr.mxu0 0.0
      %1494 = vmatpush2.msra.mxu0 0.0
      %1495 = vmatprep.subr.mxu0 0.0
      %1496 = vmatpush2.msra.mxu0 0.0
      %1497 = vmatprep.subr.mxu0 0.0
      %1498 = vmatpush2.msra.mxu0 0.0
      %1499 = vmatprep.subr.mxu0 0.0
      %1500 = vmatpush2.msra.mxu0 0.0
      %1501 = vmatprep.subr.mxu0 0.0
      %1502 = vmatpush2.msra.mxu0 0.0
      %1503 = vmatprep.subr.mxu0 0.0
      %1504 = vmatpush2.msra.mxu0 0.0
      %1505 = vmatprep.subr.mxu0 0.0
      %1506 = vmatpush2.msra.mxu0 0.0
      %1507 = vmatprep.subr.mxu0 0.0
      %1508 = vmatpush2.msra.mxu0 0.0
      %1509 = vmatprep.mubr.f32.mxu0 0.0
      %1510 = vmatmul.mubr.f32.gmra.mxu0 %v1443
      %v1511 = vpop.f32.mrf.mxu0
      %v1512 = vadd.f32 %v1440, %v1511
      %v1513 = vpop.f32.mrf.mxu0
      %1514 = vdwg.mxu0
      %v1515 = vadd.f32 %v1512, %v575
      %v1516 = vsel %vm590, %v1515, 0.0
      %1517 = vadd.xlane.f32.xlu0 %v1516
      %v1518 = vpop.xlane.xlu0 %1517
      %v1519 = vrcp.pop 32.0
      %v1520 = vmul.f32 %v1518, %v1519
      %v1521 = vsub.f32 %v1515, %v1520
      %v1522 = vmul.f32 %v1521, %v1521
      %v1523 = vsel %vm590, %v1522, 0.0
      %1524 = vadd.xlane.f32.xlu0 %v1523
      %v1525 = vpop.xlane.xlu0 %1524
      %v1526 = vmul.f32 %v1525, %v1519
      %v1527 = vadd.f32 %v1526, 1e-05
      %v1528 = vrsqrt.pop %v1527
      %v1529 = vmul.f32 %v1521, %v1528
      %v1531 = vlaneseq
      %v1532 = vshrl.u32 %v1531, 7
      %v1533 = vsub.s32 0, %v1532
      %v1534 = vrot.slane %v577, %v1533
      %v1536 = vmul.f32 %v1529, %v1534
      %v1538 = vlaneseq
      %v1539 = vshrl.u32 %v1538, 7
      %v1540 = vsub.s32 0, %v1539
      %v1541 = vrot.slane %v578, %v1540
      %v1543 = vadd.f32 %v1536, %v1541
      %v1544 = vld [vmem:[%s15] sm:$0x1]
      %v1545 = vld [vmem:[%s16] sm:$0x1]
      %v1546 = vld [vmem:[%s11] sm:$0xff]
      %v1547 = vld [vmem:[%s11 + $0x8] sm:$0xff]
      %v1548 = vld [vmem:[%s11 + $0x10] sm:$0xff]
      %v1549 = vld [vmem:[%s11 + $0x18] sm:$0xff]
      %v1550 = vld [vmem:[%s12] sm:$0x1]
      %v1552 = vlaneseq
      %v1553 = vshrl.u32 %v1552, 7
      %v1554 = vsub.s32 0, %v1553
      %v1555 = vrot.slane %v1550, %v1554
      %v1558 = vsel %vm590, %v1543, 0
      %1560 = vmatprep.subr.mxu0 0.0
      %1561 = vmatpush1.msra.mxu0 0.0
      %1562 = vmatprep.subr.mxu0 0.0
      %1563 = vmatpush1.msra.mxu0 0.0
      %1564 = vmatprep.subr.mxu0 0.0
      %1565 = vmatpush1.msra.mxu0 0.0
      %1566 = vmatprep.subr.mxu0 0.0
      %1567 = vmatpush1.msra.mxu0 0.0
      %1568 = vmatprep.subr.mxu0 0.0
      %1569 = vmatpush1.msra.mxu0 0.0
      %1570 = vmatprep.subr.mxu0 0.0
      %1571 = vmatpush1.msra.mxu0 0.0
      %1572 = vmatprep.subr.mxu0 0.0
      %1573 = vmatpush1.msra.mxu0 0.0
      %1574 = vmatprep.subr.mxu0 0.0
      %1575 = vmatpush1.msra.mxu0 0.0
      %1576 = vmatprep.subr.mxu0 0.0
      %1577 = vmatpush1.msra.mxu0 0.0
      %1578 = vmatprep.subr.mxu0 0.0
      %1579 = vmatpush1.msra.mxu0 0.0
      %1580 = vmatprep.subr.mxu0 0.0
      %1581 = vmatpush1.msra.mxu0 0.0
      %1582 = vmatprep.subr.mxu0 0.0
      %1583 = vmatpush1.msra.mxu0 0.0
      %1584 = vmatprep.subr.mxu0 0.0
      %1585 = vmatpush1.msra.mxu0 %v1549
      %1586 = vmatprep.subr.mxu0 0.0
      %1587 = vmatpush1.msra.mxu0 %v1548
      %1588 = vmatprep.subr.mxu0 0.0
      %1589 = vmatpush1.msra.mxu0 %v1547
      %1590 = vmatprep.subr.mxu0 0.0
      %1591 = vmatpush1.msra.mxu0 %v1546
      %1592 = vmatprep.subr.mxu0 0.0
      %1593 = vmatpush2.msra.mxu0 0.0
      %1594 = vmatprep.subr.mxu0 0.0
      %1595 = vmatpush2.msra.mxu0 0.0
      %1596 = vmatprep.subr.mxu0 0.0
      %1597 = vmatpush2.msra.mxu0 0.0
      %1598 = vmatprep.subr.mxu0 0.0
      %1599 = vmatpush2.msra.mxu0 0.0
      %1600 = vmatprep.subr.mxu0 0.0
      %1601 = vmatpush2.msra.mxu0 0.0
      %1602 = vmatprep.subr.mxu0 0.0
      %1603 = vmatpush2.msra.mxu0 0.0
      %1604 = vmatprep.subr.mxu0 0.0
      %1605 = vmatpush2.msra.mxu0 0.0
      %1606 = vmatprep.subr.mxu0 0.0
      %1607 = vmatpush2.msra.mxu0 0.0
      %1608 = vmatprep.subr.mxu0 0.0
      %1609 = vmatpush2.msra.mxu0 0.0
      %1610 = vmatprep.subr.mxu0 0.0
      %1611 = vmatpush2.msra.mxu0 0.0
      %1612 = vmatprep.subr.mxu0 0.0
      %1613 = vmatpush2.msra.mxu0 0.0
      %1614 = vmatprep.subr.mxu0 0.0
      %1615 = vmatpush2.msra.mxu0 0.0
      %1616 = vmatprep.subr.mxu0 0.0
      %1617 = vmatpush2.msra.mxu0 0.0
      %1618 = vmatprep.subr.mxu0 0.0
      %1619 = vmatpush2.msra.mxu0 0.0
      %1620 = vmatprep.subr.mxu0 0.0
      %1621 = vmatpush2.msra.mxu0 0.0
      %1622 = vmatprep.subr.mxu0 0.0
      %1623 = vmatpush2.msra.mxu0 0.0
      %1624 = vmatprep.mubr.f32.mxu0 0.0
      %1625 = vmatmul.mubr.f32.gmra.mxu0 %v1558
      %v1626 = vpop.f32.mrf.mxu0
      %v1627 = vadd.f32 %v1555, %v1626
      %v1628 = vpop.f32.mrf.mxu0
      %1629 = vdwg.mxu0
      %v1630 = vmax.f32 %v1627, 0.0
      %v1631 = vld [vmem:[%s13] sm:$0xff]
      %v1632 = vld [vmem:[%s13 + $0x8] sm:$0xff]
      %v1633 = vld [vmem:[%s13 + $0x10] sm:$0xff]
      %v1634 = vld [vmem:[%s13 + $0x18] sm:$0xff]
      %v1635 = vld [vmem:[%s13 + $0x20] sm:$0xff]
      %v1636 = vld [vmem:[%s13 + $0x28] sm:$0xff]
      %v1637 = vld [vmem:[%s13 + $0x30] sm:$0xff]
      %v1638 = vld [vmem:[%s13 + $0x38] sm:$0xff]
      %v1639 = vld [vmem:[%s14] sm:$0x1]
      %v1641 = vlaneseq
      %v1642 = vshrl.u32 %v1641, 7
      %v1643 = vsub.s32 0, %v1642
      %v1644 = vrot.slane %v1639, %v1643
      %vm1646 = vcmask 523264
      %v1648 = vsel %vm1646, %v1630, 0
      %1650 = vmatprep.subr.mxu0 0.0
      %1651 = vmatpush1.msra.mxu0 0.0
      %1652 = vmatprep.subr.mxu0 0.0
      %1653 = vmatpush1.msra.mxu0 0.0
      %1654 = vmatprep.subr.mxu0 0.0
      %1655 = vmatpush1.msra.mxu0 0.0
      %1656 = vmatprep.subr.mxu0 0.0
      %1657 = vmatpush1.msra.mxu0 0.0
      %1658 = vmatprep.subr.mxu0 0.0
      %1659 = vmatpush1.msra.mxu0 0.0
      %1660 = vmatprep.subr.mxu0 0.0
      %1661 = vmatpush1.msra.mxu0 0.0
      %1662 = vmatprep.subr.mxu0 0.0
      %1663 = vmatpush1.msra.mxu0 0.0
      %1664 = vmatprep.subr.mxu0 0.0
      %1665 = vmatpush1.msra.mxu0 0.0
      %1666 = vmatprep.subr.mxu0 0.0
      %1667 = vmatpush1.msra.mxu0 %v1638
      %1668 = vmatprep.subr.mxu0 0.0
      %1669 = vmatpush1.msra.mxu0 %v1637
      %1670 = vmatprep.subr.mxu0 0.0
      %1671 = vmatpush1.msra.mxu0 %v1636
      %1672 = vmatprep.subr.mxu0 0.0
      %1673 = vmatpush1.msra.mxu0 %v1635
      %1674 = vmatprep.subr.mxu0 0.0
      %1675 = vmatpush1.msra.mxu0 %v1634
      %1676 = vmatprep.subr.mxu0 0.0
      %1677 = vmatpush1.msra.mxu0 %v1633
      %1678 = vmatprep.subr.mxu0 0.0
      %1679 = vmatpush1.msra.mxu0 %v1632
      %1680 = vmatprep.subr.mxu0 0.0
      %1681 = vmatpush1.msra.mxu0 %v1631
      %1682 = vmatprep.subr.mxu0 0.0
      %1683 = vmatpush2.msra.mxu0 0.0
      %1684 = vmatprep.subr.mxu0 0.0
      %1685 = vmatpush2.msra.mxu0 0.0
      %1686 = vmatprep.subr.mxu0 0.0
      %1687 = vmatpush2.msra.mxu0 0.0
      %1688 = vmatprep.subr.mxu0 0.0
      %1689 = vmatpush2.msra.mxu0 0.0
      %1690 = vmatprep.subr.mxu0 0.0
      %1691 = vmatpush2.msra.mxu0 0.0
      %1692 = vmatprep.subr.mxu0 0.0
      %1693 = vmatpush2.msra.mxu0 0.0
      %1694 = vmatprep.subr.mxu0 0.0
      %1695 = vmatpush2.msra.mxu0 0.0
      %1696 = vmatprep.subr.mxu0 0.0
      %1697 = vmatpush2.msra.mxu0 0.0
      %1698 = vmatprep.subr.mxu0 0.0
      %1699 = vmatpush2.msra.mxu0 0.0
      %1700 = vmatprep.subr.mxu0 0.0
      %1701 = vmatpush2.msra.mxu0 0.0
      %1702 = vmatprep.subr.mxu0 0.0
      %1703 = vmatpush2.msra.mxu0 0.0
      %1704 = vmatprep.subr.mxu0 0.0
      %1705 = vmatpush2.msra.mxu0 0.0
      %1706 = vmatprep.subr.mxu0 0.0
      %1707 = vmatpush2.msra.mxu0 0.0
      %1708 = vmatprep.subr.mxu0 0.0
      %1709 = vmatpush2.msra.mxu0 0.0
      %1710 = vmatprep.subr.mxu0 0.0
      %1711 = vmatpush2.msra.mxu0 0.0
      %1712 = vmatprep.subr.mxu0 0.0
      %1713 = vmatpush2.msra.mxu0 0.0
      %1714 = vmatprep.mubr.f32.mxu0 0.0
      %1715 = vmatmul.mubr.f32.gmra.mxu0 %v1648
      %v1716 = vpop.f32.mrf.mxu0
      %v1717 = vadd.f32 %v1644, %v1716
      %v1718 = vpop.f32.mrf.mxu0
      %1719 = vdwg.mxu0
      %v1720 = vadd.f32 %v1717, %v1543
      %v1721 = vsel %vm590, %v1720, 0.0
      %1722 = vadd.xlane.f32.xlu0 %v1721
      %v1723 = vpop.xlane.xlu0 %1722
      %v1724 = vmul.f32 %v1723, %v1519
      %v1725 = vsub.f32 %v1720, %v1724
      %v1726 = vmul.f32 %v1725, %v1725
      %v1727 = vsel %vm590, %v1726, 0.0
      %1728 = vadd.xlane.f32.xlu0 %v1727
      %v1729 = vpop.xlane.xlu0 %1728
      %v1730 = vmul.f32 %v1729, %v1519
      %v1731 = vadd.f32 %v1730, 1e-05
      %v1732 = vrsqrt.pop %v1731
      %v1733 = vmul.f32 %v1725, %v1732
      %v1735 = vlaneseq
      %v1736 = vshrl.u32 %v1735, 7
      %v1737 = vsub.s32 0, %v1736
      %v1738 = vrot.slane %v1544, %v1737
      %v1740 = vmul.f32 %v1733, %v1738
      %v1742 = vlaneseq
      %v1743 = vshrl.u32 %v1742, 7
      %v1744 = vsub.s32 0, %v1743
      %v1745 = vrot.slane %v1545, %v1744
      %v1747 = vadd.f32 %v1740, %v1745
      %1748 = vst.msk [vmem:[%s574] sm:$0xff] %vm590, %v1747
      %p1749 = scmp.lt.s32.totalorder %s28, 1
      %s1750 = scalar_select %p1749, %s28, 1
      %s1751 = smul.addr %s1750, 8
      %s1752 = scalar_lea.vmem %s17, %s1751
      // Predicated region
      $region89: #{transformer_immt_encoder_layer.1} parent=87 // pred_check
        %p1753 = pneg %p418
      $region90: #{transformer_immt_encoder_layer.1} parent=87 // pred_check_branch
        %1755 = sbr.rel (%p1753) target = $region92
      $region91: #{transformer_immt_encoder_layer.1} parent=87 // pred_region
        _
      $region92: #{transformer_immt_encoder_layer.1} parent=87 // pred_fallthru
        _
    $region88: #{transformer_immt_encoder_layer.1} parent=5 // pred_fallthru
      _
    %p1756 = scmp.le.s32.totalorder 2, %s23
    // Predicated region
    $region93: #{transformer_immt_encoder_layer.1} parent=5 // pred_check
      %p1757 = pneg %p1756
    $region94: #{transformer_immt_encoder_layer.1} parent=5 // pred_check_branch
      %1759 = sbr.rel (%p1757) target = $region96
    $region95: #{transformer_immt_encoder_layer.1} parent=5 // pred_region
      %s1760 = ssub.s32 %s23, 2
      // Predicated region
      $region97: #{transformer_immt_encoder_layer.1} parent=95 // pred_check
        %p1761 = pneg %p424
      $region98: #{transformer_immt_encoder_layer.1} parent=95 // pred_check_branch
        %1763 = sbr.rel (%p1761) target = $region100
      $region99: #{transformer_immt_encoder_layer.1} parent=95 // pred_region
        %p1764 = scmp.lt.s32.totalorder %s29, 1
        %s1765 = scalar_select %p1764, %s29, 1
        %s1766 = smul.addr %s1765, 8
        %s1767 = scalar_lea.vmem %s17, %s1766
      $region100: #{transformer_immt_encoder_layer.1} parent=95 // pred_fallthru
        _
    $region96: #{transformer_immt_encoder_layer.1} parent=5 // pred_fallthru
      _
  $region6: #{transformer_immt_encoder_layer.1} parent=0 // loop_footer
    %s27 = sadd.s32 1, %s23
  $region7: #{transformer_immt_encoder_layer.1} parent=0 // loop_footer_branch
    %22 = sbr.rel target = $region3
  $region8: #{transformer_immt_encoder_layer.1} parent=0 // loop_exit
    _

</llo_original>
